<compile_context>
chip_gen: v7x
topology: tpu7x:2x2x1
jax: 0.10.0
libtpu: 0.0.40
codegen_flags: <defaults>
</compile_context>

<pallas_src>
import math
from functools import partial

import jax
import jax.numpy as jnp
from jax import lax
from jax.experimental import pallas as pl
from jax.experimental.pallas import tpu as pltpu

BN_EPS = 1e-5
LANE = 128
SUBLANE = 8
MATMUL_DTYPE = jnp.bfloat16   # jnp.float32 => exact f32 parity with PyTorch


def _round_up(v, m):
    return (v + m - 1) // m * m


def _build_kernel(layer_specs, mm_dtype):
    """Fused kernel for len(layer_specs) x (Linear -> BN(train) -> ReLU) blocks.

    layer_specs: static tuple of (row_offset_in_w_slab, n_in, n_out_used).
    Kernel args: x_ref, w_slab_ref, gb_slab_ref, o_ref — all whole-array VMEM.
    """

    def kernel(x_ref, w_ref, gb_ref, o_ref):
        h = x_ref[...]                                     # (N, n_feat) f32
        n = h.shape[0]
        inv_n = jnp.float32(1.0 / n)

        for li, (row_off, n_in, n_out) in enumerate(layer_specs):   # unrolled at trace time
            # Static slices of the packed VMEM slabs (free).
            w = w_ref[pl.ds(row_off, n_in), pl.ds(0, n_out)]        # (n_in, n_out) mm_dtype
            gb = gb_ref[pl.ds(SUBLANE * li, 2), pl.ds(0, n_out)]    # (2, n_out)   f32
            gamma = gb[0:1, :]
            beta = gb[1:2, :]

            # Linear. Bias omitted: it cancels exactly under training-mode BatchNorm.
            z = jnp.dot(h.astype(mm_dtype), w, preferred_element_type=jnp.float32)

            # One-pass BatchNorm1d (training) statistics; sublane reduces on the XLU.
            mean = jnp.sum(z, axis=0, keepdims=True) * inv_n               # (1, n_out)
            ex2 = jnp.sum(z * z, axis=0, keepdims=True) * inv_n            # (1, n_out)
            var = jnp.maximum(ex2 - mean * mean, 0.0)                      # clamp: f32 rounding

            scale = gamma * lax.rsqrt(var + BN_EPS)
            shift = beta - mean * scale
            h = jnp.maximum(z * scale + shift, 0.0)                        # BN affine + ReLU

        o_ref[...] = h.astype(o_ref.dtype)

    return kernel


def fused_mlp(x, w_slab, gb_slab, layer_specs):
    """Whole MLP as one pallas_call: 3 input DMAs, 1 lane-dense output DMA."""
    n = x.shape[0]
    out_w = layer_specs[-1][2]
    kernel = _build_kernel(layer_specs, w_slab.dtype)
    vmem = pl.BlockSpec(memory_space=pltpu.MemorySpace.VMEM)
    return pl.pallas_call(
        kernel,
        out_shape=jax.ShapeDtypeStruct((n, out_w), jnp.float32),
        in_specs=[vmem, vmem, vmem],
        out_specs=vmem,
        # TODO(synk): for large N, switch to a row-tiled grid with
        # dimension_semantics=("parallel",) (uses both v7x TensorCores) and a
        # two-pass stats/normalize structure; size tiles against v7x's 64 MiB
        # physical VMEM and v5e's 16 MiB default scoped limit
        # (pltpu.CompilerParams(vmem_limit_bytes=...)).  Total footprint here
        # is < 1 MiB, so the untiled layout is optimal for this problem size.
    )(x, w_slab, gb_slab)


@partial(jax.jit, static_argnames=("layer_specs",))
def baseline_mlp_forward_padded(x, w_slab, gb_slab, *, layer_specs):
    """Preferred entry point: returns (N, round128(n_classes)) logits.
    Padded columns are exactly 0 — fuse the [:, :n_classes] slice into the consumer."""
    return fused_mlp(x, w_slab, gb_slab, layer_specs)


@partial(jax.jit, static_argnames=("layer_specs", "n_classes"))
def baseline_mlp_forward(x, w_slab, gb_slab, *, layer_specs, n_classes):
    """Convenience wrapper with the slice fused under the same jit."""
    return fused_mlp(x, w_slab, gb_slab, layer_specs)[:, :n_classes]


def pack_params(key, layer_dims, mm_dtype=MATMUL_DTYPE):
    """Pack all layer parameters into two slabs.

    w_slab : (sum_i round_align(n_in_i), W) mm_dtype — weights stored (n_in, n_out)
             (transposed vs PyTorch) stacked along rows; final-layer columns are
             zero-padded to 128 lanes for a lane-dense HBM output store.
    gb_slab: (8 * n_layers, W) f32 — gamma at row 8*li, beta at row 8*li+1
             (stride 8 keeps every in-kernel load sublane-aligned).
    Returns (w_slab, gb_slab, layer_specs) with layer_specs static & hashable.
    """
    n_layers = len(layer_dims) - 1
    itemsize = jnp.dtype(mm_dtype).itemsize
    row_align = SUBLANE * max(1, 4 // itemsize)          # 8 for f32, 16 for bf16

    # Output widths actually used per layer (only the final layer is lane-padded).
    outs_used = []
    for li, n_out in enumerate(layer_dims[1:]):
        outs_used.append(_round_up(n_out, LANE) if li == n_layers - 1 else n_out)
    slab_w = max(_round_up(o, LANE) for o in outs_used)

    row_offs, off = [], 0
    for n_in in layer_dims[:-1]:
        row_offs.append(off)
        off += _round_up(n_in, row_align)

    w_slab = jnp.zeros((off, slab_w), mm_dtype)
    gb_slab = jnp.zeros((SUBLANE * n_layers, slab_w), jnp.float32)

    layer_specs = []
    for li, (n_in, n_out_true) in enumerate(zip(layer_dims[:-1], layer_dims[1:])):
        n_out = outs_used[li]
        key, kw = jax.random.split(key)
        bound = 1.0 / math.sqrt(n_in)                    # nn.Linear default init
        w = jax.random.uniform(kw, (n_in, n_out_true), jnp.float32, -bound, bound)
        # Only the true columns are written: padded final-layer weight columns stay
        # exactly 0, so padded logits stay exactly 0 through BN + ReLU.
        w_slab = w_slab.at[row_offs[li]:row_offs[li] + n_in, :n_out_true].set(
            w.astype(mm_dtype))
        gb_slab = gb_slab.at[SUBLANE * li, :n_out].set(1.0)   # gamma = 1
        # beta row (8*li + 1) stays 0; padded beta entries MUST remain 0.
        layer_specs.append((row_offs[li], n_in, n_out))

    return w_slab, gb_slab, tuple(layer_specs)


def mlp_reference(x, w_slab, gb_slab, layer_specs):
    """Pure-JAX reference (same packed params / same matmul dtype)."""
    h = x
    for li, (row_off, n_in, n_out) in enumerate(layer_specs):
        w = w_slab[row_off:row_off + n_in, :n_out]
        gamma = gb_slab[SUBLANE * li, :n_out][None, :]
        beta = gb_slab[SUBLANE * li + 1, :n_out][None, :]
        z = jnp.dot(h.astype(w.dtype), w, preferred_element_type=jnp.float32)
        mean = jnp.mean(z, axis=0, keepdims=True)
        var = jnp.maximum(jnp.mean(z * z, axis=0, keepdims=True) - mean * mean, 0.0)
        scale = gamma * lax.rsqrt(var + BN_EPS)
        h = jnp.maximum(z * scale + (beta - mean * scale), 0.0)
    return h


if __name__ == "__main__":
    # Shapes consistent with the module's forward: N nodes x n_features node matrix.
    n_nodes = 64
    n_features = 32
    n_classes = 4
    mlp_hidden_layer_dims = [256, 128, 64, 32, 16]
    layer_dims = [n_features] + mlp_hidden_layer_dims + [n_classes]

    key = jax.random.PRNGKey(0)
    key_x, key_p = jax.random.split(key)
    x = jax.random.normal(key_x, (n_nodes, n_features), jnp.float32)
    w_slab, gb_slab, layer_specs = pack_params(key_p, layer_dims)

    out_padded = baseline_mlp_forward_padded(x, w_slab, gb_slab, layer_specs=layer_specs)
    out_padded = jax.block_until_ready(out_padded)

    ref = mlp_reference(x, w_slab, gb_slab, layer_specs)

    assert out_padded.shape == (n_nodes, _round_up(n_classes, LANE)), out_padded.shape
    assert out_padded.dtype == jnp.float32
    assert bool(jnp.all(jnp.isfinite(out_padded)))
    assert bool(jnp.all(out_padded >= 0.0))                     # ReLU output
    assert bool(jnp.all(out_padded[:, n_classes:] == 0.0))      # padded logits exactly 0
    assert bool(jnp.allclose(out_padded, ref, atol=2e-2, rtol=2e-2))

    logits = out_padded[:, :n_classes]   # consumer-side slice, kept out of the kernel path
    assert logits.shape == (n_nodes, n_classes)
    print("KERNEL_OK")
</pallas_src>

<mosaic_0001>
module attributes {stable_mosaic.version = 11 : i64} {
  func.func @kernel(%arg0: memref<64x32xf32, #tpu.memory_space<vmem>>, %arg1: memref<528x256xbf16, #tpu.memory_space<vmem>>, %arg2: memref<48x256xf32, #tpu.memory_space<vmem>>, %arg3: memref<64x128xf32, #tpu.memory_space<vmem>>) attributes {dimension_semantics = [], scalar_prefetch = 0 : i64, scratch_operands = 0 : i64, tpu.core_type = #tpu.core_type<tc>} {
    %c0 = arith.constant 0 : index
    %c0_0 = arith.constant 0 : index
    %0 = vector.load %arg0[%c0, %c0_0] : memref<64x32xf32, #tpu.memory_space<vmem>>, vector<64x32xf32>
    %c0_1 = arith.constant 0 : index
    %c0_2 = arith.constant 0 : index
    %1 = vector.load %arg1[%c0_1, %c0_2] : memref<528x256xbf16, #tpu.memory_space<vmem>>, vector<32x256xbf16>
    %c0_3 = arith.constant 0 : index
    %c0_4 = arith.constant 0 : index
    %2 = vector.load %arg2[%c0_3, %c0_4] : memref<48x256xf32, #tpu.memory_space<vmem>>, vector<2x256xf32>
    %3 = vector.extract_strided_slice %2 {offsets = [0, 0], sizes = [1, 256], strides = [1, 1]} : vector<2x256xf32> to vector<1x256xf32>
    %4 = vector.extract_strided_slice %2 {offsets = [1, 0], sizes = [1, 256], strides = [1, 1]} : vector<2x256xf32> to vector<1x256xf32>
    %5 = arith.truncf %0 : vector<64x32xf32> to vector<64x32xbf16>
    %cst = arith.constant dense<0.000000e+00> : vector<64x256xf32>
    %6 = tpu.matmul %5, %1, %cst {dimension_numbers = #tpu.dot_dimension_numbers<[1], [0], [0], [1], [0, 0, 1, 1], [], []>} : vector<64x32xbf16>, vector<32x256xbf16>, vector<64x256xf32> -> vector<64x256xf32>
    %cst_5 = arith.constant dense<0.000000e+00> : vector<256xf32>
    %7 = vector.multi_reduction <add>, %6, %cst_5 [0] : vector<64x256xf32> to vector<256xf32>
    %8 = vector.shape_cast %7 : vector<256xf32> to vector<1x256xf32>
    %cst_6 = arith.constant 1.562500e-02 : f32
    %9 = vector.broadcast %cst_6 : f32 to vector<1x256xf32>
    %10 = arith.mulf %8, %9 : vector<1x256xf32>
    %11 = arith.mulf %6, %6 : vector<64x256xf32>
    %cst_7 = arith.constant dense<0.000000e+00> : vector<256xf32>
    %12 = vector.multi_reduction <add>, %11, %cst_7 [0] : vector<64x256xf32> to vector<256xf32>
    %13 = vector.shape_cast %12 : vector<256xf32> to vector<1x256xf32>
    %cst_8 = arith.constant 1.562500e-02 : f32
    %14 = vector.broadcast %cst_8 : f32 to vector<1x256xf32>
    %15 = arith.mulf %13, %14 : vector<1x256xf32>
    %16 = arith.mulf %10, %10 : vector<1x256xf32>
    %17 = arith.subf %15, %16 : vector<1x256xf32>
    %cst_9 = arith.constant 0.000000e+00 : f32
    %18 = vector.broadcast %cst_9 : f32 to vector<1x256xf32>
    %19 = arith.maximumf %17, %18 : vector<1x256xf32>
    %cst_10 = arith.constant 9.99999974E-6 : f32
    %20 = vector.broadcast %cst_10 : f32 to vector<1x256xf32>
    %21 = arith.addf %19, %20 : vector<1x256xf32>
    %22 = math.rsqrt %21 : vector<1x256xf32>
    %23 = arith.mulf %3, %22 : vector<1x256xf32>
    %24 = arith.mulf %10, %23 : vector<1x256xf32>
    %25 = arith.subf %4, %24 : vector<1x256xf32>
    %26 = vector.broadcast %23 : vector<1x256xf32> to vector<64x256xf32>
    %27 = arith.mulf %6, %26 : vector<64x256xf32>
    %28 = vector.broadcast %25 : vector<1x256xf32> to vector<64x256xf32>
    %29 = arith.addf %27, %28 : vector<64x256xf32>
    %cst_11 = arith.constant 0.000000e+00 : f32
    %30 = vector.broadcast %cst_11 : f32 to vector<64x256xf32>
    %31 = arith.maximumf %29, %30 : vector<64x256xf32>
    %c32 = arith.constant 32 : index
    %c0_12 = arith.constant 0 : index
    %32 = vector.load %arg1[%c32, %c0_12] : memref<528x256xbf16, #tpu.memory_space<vmem>>, vector<256x128xbf16>
    %c8 = arith.constant 8 : index
    %c0_13 = arith.constant 0 : index
    %33 = vector.load %arg2[%c8, %c0_13] : memref<48x256xf32, #tpu.memory_space<vmem>>, vector<2x128xf32>
    %34 = vector.extract_strided_slice %33 {offsets = [0, 0], sizes = [1, 128], strides = [1, 1]} : vector<2x128xf32> to vector<1x128xf32>
    %35 = vector.extract_strided_slice %33 {offsets = [1, 0], sizes = [1, 128], strides = [1, 1]} : vector<2x128xf32> to vector<1x128xf32>
    %36 = arith.truncf %31 : vector<64x256xf32> to vector<64x256xbf16>
    %cst_14 = arith.constant dense<0.000000e+00> : vector<64x128xf32>
    %37 = tpu.matmul %36, %32, %cst_14 {dimension_numbers = #tpu.dot_dimension_numbers<[1], [0], [0], [1], [0, 0, 1, 1], [], []>} : vector<64x256xbf16>, vector<256x128xbf16>, vector<64x128xf32> -> vector<64x128xf32>
    %cst_15 = arith.constant dense<0.000000e+00> : vector<128xf32>
    %38 = vector.multi_reduction <add>, %37, %cst_15 [0] : vector<64x128xf32> to vector<128xf32>
    %39 = vector.shape_cast %38 : vector<128xf32> to vector<1x128xf32>
    %cst_16 = arith.constant 1.562500e-02 : f32
    %40 = vector.broadcast %cst_16 : f32 to vector<1x128xf32>
    %41 = arith.mulf %39, %40 : vector<1x128xf32>
    %42 = arith.mulf %37, %37 : vector<64x128xf32>
    %cst_17 = arith.constant dense<0.000000e+00> : vector<128xf32>
    %43 = vector.multi_reduction <add>, %42, %cst_17 [0] : vector<64x128xf32> to vector<128xf32>
    %44 = vector.shape_cast %43 : vector<128xf32> to vector<1x128xf32>
    %cst_18 = arith.constant 1.562500e-02 : f32
    %45 = vector.broadcast %cst_18 : f32 to vector<1x128xf32>
    %46 = arith.mulf %44, %45 : vector<1x128xf32>
    %47 = arith.mulf %41, %41 : vector<1x128xf32>
    %48 = arith.subf %46, %47 : vector<1x128xf32>
    %cst_19 = arith.constant 0.000000e+00 : f32
    %49 = vector.broadcast %cst_19 : f32 to vector<1x128xf32>
    %50 = arith.maximumf %48, %49 : vector<1x128xf32>
    %cst_20 = arith.constant 9.99999974E-6 : f32
    %51 = vector.broadcast %cst_20 : f32 to vector<1x128xf32>
    %52 = arith.addf %50, %51 : vector<1x128xf32>
    %53 = math.rsqrt %52 : vector<1x128xf32>
    %54 = arith.mulf %34, %53 : vector<1x128xf32>
    %55 = arith.mulf %41, %54 : vector<1x128xf32>
    %56 = arith.subf %35, %55 : vector<1x128xf32>
    %57 = vector.broadcast %54 : vector<1x128xf32> to vector<64x128xf32>
    %58 = arith.mulf %37, %57 : vector<64x128xf32>
    %59 = vector.broadcast %56 : vector<1x128xf32> to vector<64x128xf32>
    %60 = arith.addf %58, %59 : vector<64x128xf32>
    %cst_21 = arith.constant 0.000000e+00 : f32
    %61 = vector.broadcast %cst_21 : f32 to vector<64x128xf32>
    %62 = arith.maximumf %60, %61 : vector<64x128xf32>
    %c288 = arith.constant 288 : index
    %c0_22 = arith.constant 0 : index
    %63 = vector.load %arg1[%c288, %c0_22] : memref<528x256xbf16, #tpu.memory_space<vmem>>, vector<128x64xbf16>
    %c16 = arith.constant 16 : index
    %c0_23 = arith.constant 0 : index
    %64 = vector.load %arg2[%c16, %c0_23] : memref<48x256xf32, #tpu.memory_space<vmem>>, vector<2x64xf32>
    %65 = vector.extract_strided_slice %64 {offsets = [0, 0], sizes = [1, 64], strides = [1, 1]} : vector<2x64xf32> to vector<1x64xf32>
    %66 = vector.extract_strided_slice %64 {offsets = [1, 0], sizes = [1, 64], strides = [1, 1]} : vector<2x64xf32> to vector<1x64xf32>
    %67 = arith.truncf %62 : vector<64x128xf32> to vector<64x128xbf16>
    %cst_24 = arith.constant dense<0.000000e+00> : vector<64x64xf32>
    %68 = tpu.matmul %67, %63, %cst_24 {dimension_numbers = #tpu.dot_dimension_numbers<[1], [0], [0], [1], [0, 0, 1, 1], [], []>} : vector<64x128xbf16>, vector<128x64xbf16>, vector<64x64xf32> -> vector<64x64xf32>
    %cst_25 = arith.constant dense<0.000000e+00> : vector<64xf32>
    %69 = vector.multi_reduction <add>, %68, %cst_25 [0] : vector<64x64xf32> to vector<64xf32>
    %70 = vector.shape_cast %69 : vector<64xf32> to vector<1x64xf32>
    %cst_26 = arith.constant 1.562500e-02 : f32
    %71 = vector.broadcast %cst_26 : f32 to vector<1x64xf32>
    %72 = arith.mulf %70, %71 : vector<1x64xf32>
    %73 = arith.mulf %68, %68 : vector<64x64xf32>
    %cst_27 = arith.constant dense<0.000000e+00> : vector<64xf32>
    %74 = vector.multi_reduction <add>, %73, %cst_27 [0] : vector<64x64xf32> to vector<64xf32>
    %75 = vector.shape_cast %74 : vector<64xf32> to vector<1x64xf32>
    %cst_28 = arith.constant 1.562500e-02 : f32
    %76 = vector.broadcast %cst_28 : f32 to vector<1x64xf32>
    %77 = arith.mulf %75, %76 : vector<1x64xf32>
    %78 = arith.mulf %72, %72 : vector<1x64xf32>
    %79 = arith.subf %77, %78 : vector<1x64xf32>
    %cst_29 = arith.constant 0.000000e+00 : f32
    %80 = vector.broadcast %cst_29 : f32 to vector<1x64xf32>
    %81 = arith.maximumf %79, %80 : vector<1x64xf32>
    %cst_30 = arith.constant 9.99999974E-6 : f32
    %82 = vector.broadcast %cst_30 : f32 to vector<1x64xf32>
    %83 = arith.addf %81, %82 : vector<1x64xf32>
    %84 = math.rsqrt %83 : vector<1x64xf32>
    %85 = arith.mulf %65, %84 : vector<1x64xf32>
    %86 = arith.mulf %72, %85 : vector<1x64xf32>
    %87 = arith.subf %66, %86 : vector<1x64xf32>
    %88 = vector.broadcast %85 : vector<1x64xf32> to vector<64x64xf32>
    %89 = arith.mulf %68, %88 : vector<64x64xf32>
    %90 = vector.broadcast %87 : vector<1x64xf32> to vector<64x64xf32>
    %91 = arith.addf %89, %90 : vector<64x64xf32>
    %cst_31 = arith.constant 0.000000e+00 : f32
    %92 = vector.broadcast %cst_31 : f32 to vector<64x64xf32>
    %93 = arith.maximumf %91, %92 : vector<64x64xf32>
    %c416 = arith.constant 416 : index
    %c0_32 = arith.constant 0 : index
    %94 = vector.load %arg1[%c416, %c0_32] : memref<528x256xbf16, #tpu.memory_space<vmem>>, vector<64x32xbf16>
    %c24 = arith.constant 24 : index
    %c0_33 = arith.constant 0 : index
    %95 = vector.load %arg2[%c24, %c0_33] : memref<48x256xf32, #tpu.memory_space<vmem>>, vector<2x32xf32>
    %96 = vector.extract_strided_slice %95 {offsets = [0, 0], sizes = [1, 32], strides = [1, 1]} : vector<2x32xf32> to vector<1x32xf32>
    %97 = vector.extract_strided_slice %95 {offsets = [1, 0], sizes = [1, 32], strides = [1, 1]} : vector<2x32xf32> to vector<1x32xf32>
    %98 = arith.truncf %93 : vector<64x64xf32> to vector<64x64xbf16>
    %cst_34 = arith.constant dense<0.000000e+00> : vector<64x32xf32>
    %99 = tpu.matmul %98, %94, %cst_34 {dimension_numbers = #tpu.dot_dimension_numbers<[1], [0], [0], [1], [0, 0, 1, 1], [], []>} : vector<64x64xbf16>, vector<64x32xbf16>, vector<64x32xf32> -> vector<64x32xf32>
    %cst_35 = arith.constant dense<0.000000e+00> : vector<32xf32>
    %100 = vector.multi_reduction <add>, %99, %cst_35 [0] : vector<64x32xf32> to vector<32xf32>
    %101 = vector.shape_cast %100 : vector<32xf32> to vector<1x32xf32>
    %cst_36 = arith.constant 1.562500e-02 : f32
    %102 = vector.broadcast %cst_36 : f32 to vector<1x32xf32>
    %103 = arith.mulf %101, %102 : vector<1x32xf32>
    %104 = arith.mulf %99, %99 : vector<64x32xf32>
    %cst_37 = arith.constant dense<0.000000e+00> : vector<32xf32>
    %105 = vector.multi_reduction <add>, %104, %cst_37 [0] : vector<64x32xf32> to vector<32xf32>
    %106 = vector.shape_cast %105 : vector<32xf32> to vector<1x32xf32>
    %cst_38 = arith.constant 1.562500e-02 : f32
    %107 = vector.broadcast %cst_38 : f32 to vector<1x32xf32>
    %108 = arith.mulf %106, %107 : vector<1x32xf32>
    %109 = arith.mulf %103, %103 : vector<1x32xf32>
    %110 = arith.subf %108, %109 : vector<1x32xf32>
    %cst_39 = arith.constant 0.000000e+00 : f32
    %111 = vector.broadcast %cst_39 : f32 to vector<1x32xf32>
    %112 = arith.maximumf %110, %111 : vector<1x32xf32>
    %cst_40 = arith.constant 9.99999974E-6 : f32
    %113 = vector.broadcast %cst_40 : f32 to vector<1x32xf32>
    %114 = arith.addf %112, %113 : vector<1x32xf32>
    %115 = math.rsqrt %114 : vector<1x32xf32>
    %116 = arith.mulf %96, %115 : vector<1x32xf32>
    %117 = arith.mulf %103, %116 : vector<1x32xf32>
    %118 = arith.subf %97, %117 : vector<1x32xf32>
    %119 = vector.broadcast %116 : vector<1x32xf32> to vector<64x32xf32>
    %120 = arith.mulf %99, %119 : vector<64x32xf32>
    %121 = vector.broadcast %118 : vector<1x32xf32> to vector<64x32xf32>
    %122 = arith.addf %120, %121 : vector<64x32xf32>
    %cst_41 = arith.constant 0.000000e+00 : f32
    %123 = vector.broadcast %cst_41 : f32 to vector<64x32xf32>
    %124 = arith.maximumf %122, %123 : vector<64x32xf32>
    %c480 = arith.constant 480 : index
    %c0_42 = arith.constant 0 : index
    %125 = vector.load %arg1[%c480, %c0_42] : memref<528x256xbf16, #tpu.memory_space<vmem>>, vector<32x16xbf16>
    %c32_43 = arith.constant 32 : index
    %c0_44 = arith.constant 0 : index
    %126 = vector.load %arg2[%c32_43, %c0_44] : memref<48x256xf32, #tpu.memory_space<vmem>>, vector<2x16xf32>
    %127 = vector.extract_strided_slice %126 {offsets = [0, 0], sizes = [1, 16], strides = [1, 1]} : vector<2x16xf32> to vector<1x16xf32>
    %128 = vector.extract_strided_slice %126 {offsets = [1, 0], sizes = [1, 16], strides = [1, 1]} : vector<2x16xf32> to vector<1x16xf32>
    %129 = arith.truncf %124 : vector<64x32xf32> to vector<64x32xbf16>
    %cst_45 = arith.constant dense<0.000000e+00> : vector<64x16xf32>
    %130 = tpu.matmul %129, %125, %cst_45 {dimension_numbers = #tpu.dot_dimension_numbers<[1], [0], [0], [1], [0, 0, 1, 1], [], []>} : vector<64x32xbf16>, vector<32x16xbf16>, vector<64x16xf32> -> vector<64x16xf32>
    %cst_46 = arith.constant dense<0.000000e+00> : vector<16xf32>
    %131 = vector.multi_reduction <add>, %130, %cst_46 [0] : vector<64x16xf32> to vector<16xf32>
    %132 = vector.shape_cast %131 : vector<16xf32> to vector<1x16xf32>
    %cst_47 = arith.constant 1.562500e-02 : f32
    %133 = vector.broadcast %cst_47 : f32 to vector<1x16xf32>
    %134 = arith.mulf %132, %133 : vector<1x16xf32>
    %135 = arith.mulf %130, %130 : vector<64x16xf32>
    %cst_48 = arith.constant dense<0.000000e+00> : vector<16xf32>
    %136 = vector.multi_reduction <add>, %135, %cst_48 [0] : vector<64x16xf32> to vector<16xf32>
    %137 = vector.shape_cast %136 : vector<16xf32> to vector<1x16xf32>
    %cst_49 = arith.constant 1.562500e-02 : f32
    %138 = vector.broadcast %cst_49 : f32 to vector<1x16xf32>
    %139 = arith.mulf %137, %138 : vector<1x16xf32>
    %140 = arith.mulf %134, %134 : vector<1x16xf32>
    %141 = arith.subf %139, %140 : vector<1x16xf32>
    %cst_50 = arith.constant 0.000000e+00 : f32
    %142 = vector.broadcast %cst_50 : f32 to vector<1x16xf32>
    %143 = arith.maximumf %141, %142 : vector<1x16xf32>
    %cst_51 = arith.constant 9.99999974E-6 : f32
    %144 = vector.broadcast %cst_51 : f32 to vector<1x16xf32>
    %145 = arith.addf %143, %144 : vector<1x16xf32>
    %146 = math.rsqrt %145 : vector<1x16xf32>
    %147 = arith.mulf %127, %146 : vector<1x16xf32>
    %148 = arith.mulf %134, %147 : vector<1x16xf32>
    %149 = arith.subf %128, %148 : vector<1x16xf32>
    %150 = vector.broadcast %147 : vector<1x16xf32> to vector<64x16xf32>
    %151 = arith.mulf %130, %150 : vector<64x16xf32>
    %152 = vector.broadcast %149 : vector<1x16xf32> to vector<64x16xf32>
    %153 = arith.addf %151, %152 : vector<64x16xf32>
    %cst_52 = arith.constant 0.000000e+00 : f32
    %154 = vector.broadcast %cst_52 : f32 to vector<64x16xf32>
    %155 = arith.maximumf %153, %154 : vector<64x16xf32>
    %c512 = arith.constant 512 : index
    %c0_53 = arith.constant 0 : index
    %156 = vector.load %arg1[%c512, %c0_53] : memref<528x256xbf16, #tpu.memory_space<vmem>>, vector<16x128xbf16>
    %c40 = arith.constant 40 : index
    %c0_54 = arith.constant 0 : index
    %157 = vector.load %arg2[%c40, %c0_54] : memref<48x256xf32, #tpu.memory_space<vmem>>, vector<2x128xf32>
    %158 = vector.extract_strided_slice %157 {offsets = [0, 0], sizes = [1, 128], strides = [1, 1]} : vector<2x128xf32> to vector<1x128xf32>
    %159 = vector.extract_strided_slice %157 {offsets = [1, 0], sizes = [1, 128], strides = [1, 1]} : vector<2x128xf32> to vector<1x128xf32>
    %160 = arith.truncf %155 : vector<64x16xf32> to vector<64x16xbf16>
    %cst_55 = arith.constant dense<0.000000e+00> : vector<64x128xf32>
    %161 = tpu.matmul %160, %156, %cst_55 {dimension_numbers = #tpu.dot_dimension_numbers<[1], [0], [0], [1], [0, 0, 1, 1], [], []>} : vector<64x16xbf16>, vector<16x128xbf16>, vector<64x128xf32> -> vector<64x128xf32>
    %cst_56 = arith.constant dense<0.000000e+00> : vector<128xf32>
    %162 = vector.multi_reduction <add>, %161, %cst_56 [0] : vector<64x128xf32> to vector<128xf32>
    %163 = vector.shape_cast %162 : vector<128xf32> to vector<1x128xf32>
    %cst_57 = arith.constant 1.562500e-02 : f32
    %164 = vector.broadcast %cst_57 : f32 to vector<1x128xf32>
    %165 = arith.mulf %163, %164 : vector<1x128xf32>
    %166 = arith.mulf %161, %161 : vector<64x128xf32>
    %cst_58 = arith.constant dense<0.000000e+00> : vector<128xf32>
    %167 = vector.multi_reduction <add>, %166, %cst_58 [0] : vector<64x128xf32> to vector<128xf32>
    %168 = vector.shape_cast %167 : vector<128xf32> to vector<1x128xf32>
    %cst_59 = arith.constant 1.562500e-02 : f32
    %169 = vector.broadcast %cst_59 : f32 to vector<1x128xf32>
    %170 = arith.mulf %168, %169 : vector<1x128xf32>
    %171 = arith.mulf %165, %165 : vector<1x128xf32>
    %172 = arith.subf %170, %171 : vector<1x128xf32>
    %cst_60 = arith.constant 0.000000e+00 : f32
    %173 = vector.broadcast %cst_60 : f32 to vector<1x128xf32>
    %174 = arith.maximumf %172, %173 : vector<1x128xf32>
    %cst_61 = arith.constant 9.99999974E-6 : f32
    %175 = vector.broadcast %cst_61 : f32 to vector<1x128xf32>
    %176 = arith.addf %174, %175 : vector<1x128xf32>
    %177 = math.rsqrt %176 : vector<1x128xf32>
    %178 = arith.mulf %158, %177 : vector<1x128xf32>
    %179 = arith.mulf %165, %178 : vector<1x128xf32>
    %180 = arith.subf %159, %179 : vector<1x128xf32>
    %181 = vector.broadcast %178 : vector<1x128xf32> to vector<64x128xf32>
    %182 = arith.mulf %161, %181 : vector<64x128xf32>
    %183 = vector.broadcast %180 : vector<1x128xf32> to vector<64x128xf32>
    %184 = arith.addf %182, %183 : vector<64x128xf32>
    %cst_62 = arith.constant 0.000000e+00 : f32
    %185 = vector.broadcast %cst_62 : f32 to vector<64x128xf32>
    %186 = arith.maximumf %184, %185 : vector<64x128xf32>
    %c0_63 = arith.constant 0 : index
    %c0_64 = arith.constant 0 : index
    %187 = vector.load %arg3[%c0_63, %c0_64] : memref<64x128xf32, #tpu.memory_space<vmem>>, vector<64x128xf32>
    tpu.vector_store %arg3[%c0_63, %c0_64], %186 {strides = array<i32>} : memref<64x128xf32, #tpu.memory_space<vmem>>, vector<64x128xf32>,
    return
  }
}

</mosaic_0001>

<llo_original>
// kernel: baseline_mlp_forward_padded.1
$region0: #{baseline_mlp_forward_padded.1}
  #allocation0 [shape = 'u32[]', space=smem, size = 0x4, offset = 0x4, fixed_abs, tag = 'smem constant byte address 0x4 - core index']
  #allocation1 [shape = 'u32[144,128]{1,0:T(1,128)}', space=vmem, size = 0x12000, scoped, tag = 'internal scratch']
  %s0 = inlined_call_operand.vmem [shape: f32[64,32], index: 0, kind: input, shape index: {}]
  %s1 = inlined_call_operand.hbm [shape: bf16[528,256], index: 1, kind: input, shape index: {}]
  %s2 = inlined_call_operand.vmem [shape: f32[48,256], index: 2, kind: input, shape index: {}]
  %s3 = inlined_call_operand.hbm [shape: f32[64,128], index: 3, kind: output, shape index: {}]
  %s4 = sld [smem:[#allocation0]]
  $region26: #{baseline_mlp_forward_padded.1} parent=0
    _
  %s6 = ssub.s32 1, %s4
  %s7 = scalar_select 0, %s6, %s4
  $region1: #{baseline_mlp_forward_padded.1} parent=0
    #allocation2 [shape = 'u8[270336]{0}', space=vmem, size = 0x42000, scoped, tag = 'input window, operand 1, single buffered']
    #allocation3 [shape = 's32[1]{0}', space=sflag, size = 0x4, scoped, tag = 'scoped memory for baseline_mlp_forward_padded.1']
    #allocation4 [shape = 's32[1]{0}', space=sflag, size = 0x4, scoped, tag = 'scoped memory for baseline_mlp_forward_padded.1']
    #allocation5 [shape = 'u8[32768]{0}', space=vmem, size = 0x8000, scoped, tag = 'output window, operand 0, single buffered']
    %8 = vsyncpa [#allocation3], 0
    %9 = vsyncpa [#allocation4], 0
    // Predicated region
    $region2: #{baseline_mlp_forward_padded.1} parent=1 // pred_check
      _
    $region3: #{baseline_mlp_forward_padded.1} parent=1 // pred_check_branch
      %11 = sbr.rel (0) target = $region5
    $region4: #{baseline_mlp_forward_padded.1} parent=1 // pred_region
      _
    $region5: #{baseline_mlp_forward_padded.1} parent=1 // pred_fallthru
      _
    // Predicated region
    $region6: #{baseline_mlp_forward_padded.1} parent=1 // pred_check
      _
    $region7: #{baseline_mlp_forward_padded.1} parent=1 // pred_check_branch
      %13 = sbr.rel (0) target = $region9
    $region8: #{baseline_mlp_forward_padded.1} parent=1 // pred_region
      %s15 = ssub.s32 8448, 8448
      %16 = vsyncadd [#allocation3], %s15
      %s17 = sshll.u32 [#allocation2], 4
      %s18 = int_to_ptr.vmem [resolvable:$true] %s17
      %23 = dma.hbm_to_vmem [thread:$0]  %s1, 8448, %s18, [#allocation3], 128, 128, 8
    $region9: #{baseline_mlp_forward_padded.1} parent=1 // pred_fallthru
      _
    // Predicated region
    $region10: #{baseline_mlp_forward_padded.1} parent=1 // pred_check
      _
    $region11: #{baseline_mlp_forward_padded.1} parent=1 // pred_check_branch
      %25 = sbr.rel (0) target = $region13
    $region12: #{baseline_mlp_forward_padded.1} parent=1 // pred_region
      _
    $region13: #{baseline_mlp_forward_padded.1} parent=1 // pred_fallthru
      _
    // Predicated region
    $region14: #{baseline_mlp_forward_padded.1} parent=1 // pred_check
      _
    $region15: #{baseline_mlp_forward_padded.1} parent=1 // pred_check_branch
      %27 = sbr.rel (0) target = $region17
    $region16: #{baseline_mlp_forward_padded.1} parent=1 // pred_region
      %28 = dma.done [#allocation3], 8448
    $region17: #{baseline_mlp_forward_padded.1} parent=1 // pred_fallthru
      _
    %v30 = vld [vmem:[%s0] sm:$0xff]
    %v31 = vld [vmem:[%s0 + $0x8] sm:$0xff]
    %v32 = vld [vmem:[%s0 + $0x10] sm:$0xff]
    %v33 = vld [vmem:[%s0 + $0x18] sm:$0xff]
    %v34 = vld [vmem:[%s0 + $0x20] sm:$0xff]
    %v35 = vld [vmem:[%s0 + $0x28] sm:$0xff]
    %v36 = vld [vmem:[%s0 + $0x30] sm:$0xff]
    %v37 = vld [vmem:[%s0 + $0x38] sm:$0xff]
    %v38 = vld [vmem:[#allocation2] sm:$0xff]
    %v39 = vld [vmem:[#allocation2 + $0x8] sm:$0xff]
    %v40 = vld [vmem:[#allocation2 + $0x10] sm:$0xff]
    %v41 = vld [vmem:[#allocation2 + $0x18] sm:$0xff]
    %v42 = vld [vmem:[%s2] sm:$0x3]
    %v43 = vld [vmem:[%s2 + $0x8] sm:$0x3]
    %v44 = vpack.c.bf16 %v31, %v30
    %v45 = vpack.c.bf16 %v33, %v32
    %v46 = vpack.c.bf16 %v35, %v34
    %v47 = vpack.c.bf16 %v37, %v36
    %v52 = vunpack.c.l.b16 %v38
    %v53 = vunpack.c.h.b16 %v38
    %v54 = vunpack.c.l.b16 %v39
    %v55 = vunpack.c.h.b16 %v39
    %v56 = vunpack.c.l.b16 %v40
    %v57 = vunpack.c.h.b16 %v40
    %v58 = vunpack.c.l.b16 %v41
    %v59 = vunpack.c.h.b16 %v41
    %v60 = vpack.c.b16 %v54, %v52
    %v61 = vpack.c.b16 %v55, %v53
    %v62 = vpack.c.b16 %v58, %v56
    %v63 = vpack.c.b16 %v59, %v57
    %vm68 = vcmask 261120
    %v70 = vsel %vm68, %v44, 0
    %v73 = vsel %vm68, %v45, 0
    %v76 = vsel %vm68, %v46, 0
    %v79 = vsel %vm68, %v47, 0
    %81 = vmatprep.subr.bf16.mxu0 %v61
    %82 = vmatpush1.bf16.msra.mxu0 %v60
    %83 = vmatprep.subr.bf16.mxu0 %v63
    %84 = vmatpush1.bf16.msra.mxu0 %v62
    %85 = vmatprep.subr.bf16.mxu0 0
    %86 = vmatpush1.bf16.msra.mxu0 0
    %87 = vmatprep.subr.bf16.mxu0 0
    %88 = vmatpush1.bf16.msra.mxu0 0
    %89 = vmatprep.subr.bf16.mxu0 0
    %90 = vmatpush1.bf16.msra.mxu0 0
    %91 = vmatprep.subr.bf16.mxu0 0
    %92 = vmatpush1.bf16.msra.mxu0 0
    %93 = vmatprep.subr.bf16.mxu0 0
    %94 = vmatpush1.bf16.msra.mxu0 0
    %95 = vmatprep.subr.bf16.mxu0 0
    %96 = vmatpush1.bf16.msra.mxu0 0
    %97 = vmatprep.subr.bf16.mxu0 0
    %98 = vmatpush1.bf16.msra.mxu0 0
    %99 = vmatprep.subr.bf16.mxu0 0
    %100 = vmatpush1.bf16.msra.mxu0 0
    %101 = vmatprep.subr.bf16.mxu0 0
    %102 = vmatpush1.bf16.msra.mxu0 0
    %103 = vmatprep.subr.bf16.mxu0 0
    %104 = vmatpush1.bf16.msra.mxu0 0
    %105 = vmatprep.subr.bf16.mxu0 0
    %106 = vmatpush1.bf16.msra.mxu0 0
    %107 = vmatprep.subr.bf16.mxu0 0
    %108 = vmatpush1.bf16.msra.mxu0 0
    %109 = vmatprep.subr.bf16.mxu0 0
    %110 = vmatpush1.bf16.msra.mxu0 0
    %111 = vmatprep.subr.bf16.mxu0 0
    %112 = vmatpush1.bf16.msra.mxu0 0
    %113 = vmatprep.mubr.bf16.mxu0 0
    %114 = vmatmul.mubr.bf16.gmra.mrb[0].mxu0 %v70
    %v115 = vpop.f32.mrb[0].mxu0
    %v116 = vadd.f32 0.0, %v115
    %v117 = vpop.f32.mrb[0].mxu0
    %v118 = vadd.f32 0.0, %v117
    %v119 = vpop.f32.mrb[0].mxu0
    %v120 = vadd.f32 0.0, %v119
    %v121 = vpop.f32.mrb[0].mxu0
    %v122 = vadd.f32 0.0, %v121
    %123 = vmatprep.mubr.bf16.mxu0 0
    %124 = vmatmul.mubr.bf16.gmra.mrb[0].mxu0 %v73
    %v125 = vpop.f32.mrb[0].mxu0
    %v126 = vadd.f32 0.0, %v125
    %v127 = vpop.f32.mrb[0].mxu0
    %v128 = vadd.f32 0.0, %v127
    %v129 = vpop.f32.mrb[0].mxu0
    %v130 = vadd.f32 0.0, %v129
    %v131 = vpop.f32.mrb[0].mxu0
    %v132 = vadd.f32 0.0, %v131
    %133 = vmatprep.mubr.bf16.mxu0 0
    %134 = vmatmul.mubr.bf16.gmra.mrb[0].mxu0 %v76
    %v135 = vpop.f32.mrb[0].mxu0
    %v136 = vadd.f32 0.0, %v135
    %v137 = vpop.f32.mrb[0].mxu0
    %v138 = vadd.f32 0.0, %v137
    %v139 = vpop.f32.mrb[0].mxu0
    %v140 = vadd.f32 0.0, %v139
    %v141 = vpop.f32.mrb[0].mxu0
    %v142 = vadd.f32 0.0, %v141
    %143 = vmatprep.mubr.bf16.mxu0 0
    %144 = vmatmul.mubr.bf16.gmra.mrb[0].mxu0 %v79
    %v145 = vpop.f32.mrb[0].mxu0
    %v146 = vadd.f32 0.0, %v145
    %v147 = vpop.f32.mrb[0].mxu0
    %v148 = vadd.f32 0.0, %v147
    %v149 = vpop.f32.mrb[0].mxu0
    %v150 = vadd.f32 0.0, %v149
    %v151 = vpop.f32.mrb[0].mxu0
    %v152 = vadd.f32 0.0, %v151
    %153 = vdwg.mxu0
    %v154 = vadd.f32 %v116, %v120
    %v155 = vadd.f32 %v154, %v126
    %v156 = vadd.f32 %v155, %v130
    %v157 = vadd.f32 %v156, %v136
    %v158 = vadd.f32 %v157, %v140
    %v159 = vadd.f32 %v158, %v146
    %v160 = vadd.f32 %v159, %v150
    %v161 = vrot.slane %v160, 4
    %v162 = vadd.f32 %v160, %v161
    %v163 = vrot.slane %v162, 2
    %v164 = vadd.f32 %v162, %v163
    %v165 = vrot.slane %v164, 1
    %v166 = vadd.f32 %v164, %v165
    %v167 = vadd.f32 %v118, %v122
    %v168 = vadd.f32 %v167, %v128
    %v169 = vadd.f32 %v168, %v132
    %v170 = vadd.f32 %v169, %v138
    %v171 = vadd.f32 %v170, %v142
    %v172 = vadd.f32 %v171, %v148
    %v173 = vadd.f32 %v172, %v152
    %v174 = vrot.slane %v173, 4
    %v175 = vadd.f32 %v173, %v174
    %v176 = vrot.slane %v175, 2
    %v177 = vadd.f32 %v175, %v176
    %v178 = vrot.slane %v177, 1
    %v179 = vadd.f32 %v177, %v178
    %v180 = vmul.f32 %v166, 0.015625
    %v181 = vmul.f32 %v179, 0.015625
    %v182 = vmul.f32 %v116, %v116
    %v183 = vmul.f32 %v118, %v118
    %v184 = vmul.f32 %v120, %v120
    %v185 = vmul.f32 %v122, %v122
    %v186 = vmul.f32 %v126, %v126
    %v187 = vmul.f32 %v128, %v128
    %v188 = vmul.f32 %v130, %v130
    %v189 = vmul.f32 %v132, %v132
    %v190 = vmul.f32 %v136, %v136
    %v191 = vmul.f32 %v138, %v138
    %v192 = vmul.f32 %v140, %v140
    %v193 = vmul.f32 %v142, %v142
    %v194 = vmul.f32 %v146, %v146
    %v195 = vmul.f32 %v148, %v148
    %v196 = vmul.f32 %v150, %v150
    %v197 = vmul.f32 %v152, %v152
    %v198 = vadd.f32 %v182, %v184
    %v199 = vadd.f32 %v198, %v186
    %v200 = vadd.f32 %v199, %v188
    %v201 = vadd.f32 %v200, %v190
    %v202 = vadd.f32 %v201, %v192
    %v203 = vadd.f32 %v202, %v194
    %v204 = vadd.f32 %v203, %v196
    %v205 = vrot.slane %v204, 4
    %v206 = vadd.f32 %v204, %v205
    %v207 = vrot.slane %v206, 2
    %v208 = vadd.f32 %v206, %v207
    %v209 = vrot.slane %v208, 1
    %v210 = vadd.f32 %v208, %v209
    %v211 = vadd.f32 %v183, %v185
    %v212 = vadd.f32 %v211, %v187
    %v213 = vadd.f32 %v212, %v189
    %v214 = vadd.f32 %v213, %v191
    %v215 = vadd.f32 %v214, %v193
    %v216 = vadd.f32 %v215, %v195
    %v217 = vadd.f32 %v216, %v197
    %v218 = vrot.slane %v217, 4
    %v219 = vadd.f32 %v217, %v218
    %v220 = vrot.slane %v219, 2
    %v221 = vadd.f32 %v219, %v220
    %v222 = vrot.slane %v221, 1
    %v223 = vadd.f32 %v221, %v222
    %v224 = vmul.f32 %v210, 0.015625
    %v225 = vmul.f32 %v223, 0.015625
    %v226 = vmul.f32 %v180, %v180
    %v227 = vmul.f32 %v181, %v181
    %v228 = vsub.f32 %v224, %v226
    %v229 = vsub.f32 %v225, %v227
    %v230 = vmax.f32 %v228, 0.0
    %v231 = vmax.f32 %v229, 0.0
    %v232 = vadd.f32 %v230, 1e-05
    %v233 = vadd.f32 %v231, 1e-05
    %v234 = vrsqrt.pop %v232
    %v235 = vrsqrt.pop %v233
    %v236 = vmul.f32 %v42, %v234
    %v237 = vmul.f32 %v43, %v235
    %v238 = vmul.f32 %v180, %v236
    %v239 = vmul.f32 %v181, %v237
    %v242 = vrot.slane %v238, 7
    %v243 = vrot.slane %v239, 7
    %v246 = vsub.f32 %v42, %v242
    %v247 = vsub.f32 %v43, %v243
    %v248 = vlaneseq
    %v249 = vshrl.u32 %v248, 7
    %v250 = vsub.s32 0, %v249
    %v251 = vrot.slane %v236, %v250
    %v252 = vlaneseq
    %v253 = vshrl.u32 %v252, 7
    %v254 = vsub.s32 0, %v253
    %v255 = vrot.slane %v237, %v254
    %v256 = vmul.f32 %v116, %v251
    %v257 = vmul.f32 %v118, %v255
    %v258 = vmul.f32 %v120, %v251
    %v259 = vmul.f32 %v122, %v255
    %v260 = vmul.f32 %v126, %v251
    %v261 = vmul.f32 %v128, %v255
    %v262 = vmul.f32 %v130, %v251
    %v263 = vmul.f32 %v132, %v255
    %v264 = vmul.f32 %v136, %v251
    %v265 = vmul.f32 %v138, %v255
    %v266 = vmul.f32 %v140, %v251
    %v267 = vmul.f32 %v142, %v255
    %v268 = vmul.f32 %v146, %v251
    %v269 = vmul.f32 %v148, %v255
    %v270 = vmul.f32 %v150, %v251
    %v271 = vmul.f32 %v152, %v255
    %v272 = vlaneseq
    %v273 = vshrl.u32 %v272, 7
    %v274 = vsub.s32 1, %v273
    %v275 = vrot.slane %v246, %v274
    %v276 = vlaneseq
    %v277 = vshrl.u32 %v276, 7
    %v278 = vsub.s32 1, %v277
    %v279 = vrot.slane %v247, %v278
    %v280 = vadd.f32 %v256, %v275
    %v281 = vadd.f32 %v257, %v279
    %v282 = vadd.f32 %v258, %v275
    %v283 = vadd.f32 %v259, %v279
    %v284 = vadd.f32 %v260, %v275
    %v285 = vadd.f32 %v261, %v279
    %v286 = vadd.f32 %v262, %v275
    %v287 = vadd.f32 %v263, %v279
    %v288 = vadd.f32 %v264, %v275
    %v289 = vadd.f32 %v265, %v279
    %v290 = vadd.f32 %v266, %v275
    %v291 = vadd.f32 %v267, %v279
    %v292 = vadd.f32 %v268, %v275
    %v293 = vadd.f32 %v269, %v279
    %v294 = vadd.f32 %v270, %v275
    %v295 = vadd.f32 %v271, %v279
    %v296 = vmax.f32 %v280, 0.0
    %v297 = vmax.f32 %v281, 0.0
    %v298 = vmax.f32 %v282, 0.0
    %v299 = vmax.f32 %v283, 0.0
    %v300 = vmax.f32 %v284, 0.0
    %v301 = vmax.f32 %v285, 0.0
    %v302 = vmax.f32 %v286, 0.0
    %v303 = vmax.f32 %v287, 0.0
    %v304 = vmax.f32 %v288, 0.0
    %v305 = vmax.f32 %v289, 0.0
    %v306 = vmax.f32 %v290, 0.0
    %v307 = vmax.f32 %v291, 0.0
    %v308 = vmax.f32 %v292, 0.0
    %v309 = vmax.f32 %v293, 0.0
    %v310 = vmax.f32 %v294, 0.0
    %v311 = vmax.f32 %v295, 0.0
    %v312 = vld [vmem:[#allocation2 + $0x20] sm:$0xf]
    %v313 = vld [vmem:[#allocation2 + $0x28] sm:$0xf]
    %v314 = vld [vmem:[#allocation2 + $0x30] sm:$0xf]
    %v315 = vld [vmem:[#allocation2 + $0x38] sm:$0xf]
    %v316 = vld [vmem:[#allocation2 + $0x40] sm:$0xf]
    %v317 = vld [vmem:[#allocation2 + $0x48] sm:$0xf]
    %v318 = vld [vmem:[#allocation2 + $0x50] sm:$0xf]
    %v319 = vld [vmem:[#allocation2 + $0x58] sm:$0xf]
    %v320 = vld [vmem:[#allocation2 + $0x60] sm:$0xf]
    %v321 = vld [vmem:[#allocation2 + $0x68] sm:$0xf]
    %v322 = vld [vmem:[#allocation2 + $0x70] sm:$0xf]
    %v323 = vld [vmem:[#allocation2 + $0x78] sm:$0xf]
    %v324 = vld [vmem:[#allocation2 + $0x80] sm:$0xf]
    %v325 = vld [vmem:[#allocation2 + $0x88] sm:$0xf]
    %v326 = vld [vmem:[#allocation2 + $0x90] sm:$0xf]
    %v327 = vld [vmem:[#allocation2 + $0x98] sm:$0xf]
    %v328 = vld [vmem:[#allocation2 + $0xa0] sm:$0xf]
    %v329 = vld [vmem:[#allocation2 + $0xa8] sm:$0xf]
    %v330 = vld [vmem:[#allocation2 + $0xb0] sm:$0xf]
    %v331 = vld [vmem:[#allocation2 + $0xb8] sm:$0xf]
    %v332 = vld [vmem:[#allocation2 + $0xc0] sm:$0xf]
    %v333 = vld [vmem:[#allocation2 + $0xc8] sm:$0xf]
    %v334 = vld [vmem:[#allocation2 + $0xd0] sm:$0xf]
    %v335 = vld [vmem:[#allocation2 + $0xd8] sm:$0xf]
    %v336 = vld [vmem:[#allocation2 + $0xe0] sm:$0xf]
    %v337 = vld [vmem:[#allocation2 + $0xe8] sm:$0xf]
    %v338 = vld [vmem:[#allocation2 + $0xf0] sm:$0xf]
    %v339 = vld [vmem:[#allocation2 + $0xf8] sm:$0xf]
    %v340 = vld [vmem:[#allocation2 + $0x100] sm:$0xf]
    %v341 = vld [vmem:[#allocation2 + $0x108] sm:$0xf]
    %v342 = vld [vmem:[#allocation2 + $0x110] sm:$0xf]
    %v343 = vld [vmem:[#allocation2 + $0x118] sm:$0xf]
    %v344 = vld [vmem:[%s2 + $0x10] sm:$0x3]
    %v345 = vpack.c.bf16 %v298, %v296
    %v346 = vpack.c.bf16 %v299, %v297
    %v347 = vpack.c.bf16 %v302, %v300
    %v348 = vpack.c.bf16 %v303, %v301
    %v349 = vpack.c.bf16 %v306, %v304
    %v350 = vpack.c.bf16 %v307, %v305
    %v351 = vpack.c.bf16 %v310, %v308
    %v352 = vpack.c.bf16 %v311, %v309
    %v385 = vunpack.c.l.b16 %v312
    %v386 = vunpack.c.l.b16 %v313
    %v387 = vunpack.c.l.b16 %v314
    %v388 = vunpack.c.l.b16 %v315
    %v389 = vunpack.c.l.b16 %v316
    %v390 = vunpack.c.l.b16 %v317
    %v391 = vunpack.c.l.b16 %v318
    %v392 = vunpack.c.l.b16 %v319
    %v393 = vunpack.c.l.b16 %v320
    %v394 = vunpack.c.l.b16 %v321
    %v395 = vunpack.c.l.b16 %v322
    %v396 = vunpack.c.l.b16 %v323
    %v397 = vunpack.c.l.b16 %v324
    %v398 = vunpack.c.l.b16 %v325
    %v399 = vunpack.c.l.b16 %v326
    %v400 = vunpack.c.l.b16 %v327
    %v401 = vunpack.c.l.b16 %v328
    %v402 = vunpack.c.l.b16 %v329
    %v403 = vunpack.c.l.b16 %v330
    %v404 = vunpack.c.l.b16 %v331
    %v405 = vunpack.c.l.b16 %v332
    %v406 = vunpack.c.l.b16 %v333
    %v407 = vunpack.c.l.b16 %v334
    %v408 = vunpack.c.l.b16 %v335
    %v409 = vunpack.c.l.b16 %v336
    %v410 = vunpack.c.l.b16 %v337
    %v411 = vunpack.c.l.b16 %v338
    %v412 = vunpack.c.l.b16 %v339
    %v413 = vunpack.c.l.b16 %v340
    %v414 = vunpack.c.l.b16 %v341
    %v415 = vunpack.c.l.b16 %v342
    %v416 = vunpack.c.l.b16 %v343
    %v417 = vpack.c.b16 %v386, %v385
    %v418 = vpack.c.b16 %v388, %v387
    %v419 = vpack.c.b16 %v390, %v389
    %v420 = vpack.c.b16 %v392, %v391
    %v421 = vpack.c.b16 %v394, %v393
    %v422 = vpack.c.b16 %v396, %v395
    %v423 = vpack.c.b16 %v398, %v397
    %v424 = vpack.c.b16 %v400, %v399
    %v425 = vpack.c.b16 %v402, %v401
    %v426 = vpack.c.b16 %v404, %v403
    %v427 = vpack.c.b16 %v406, %v405
    %v428 = vpack.c.b16 %v408, %v407
    %v429 = vpack.c.b16 %v410, %v409
    %v430 = vpack.c.b16 %v412, %v411
    %v431 = vpack.c.b16 %v414, %v413
    %v432 = vpack.c.b16 %v416, %v415
    %449 = vmatprep.subr.bf16.mxu0 0
    %450 = vmatpush1.bf16.msra.mxu0 %v417
    %451 = vmatprep.subr.bf16.mxu0 0
    %452 = vmatpush1.bf16.msra.mxu0 %v418
    %453 = vmatprep.subr.bf16.mxu0 0
    %454 = vmatpush1.bf16.msra.mxu0 %v419
    %455 = vmatprep.subr.bf16.mxu0 0
    %456 = vmatpush1.bf16.msra.mxu0 %v420
    %457 = vmatprep.subr.bf16.mxu0 0
    %458 = vmatpush1.bf16.msra.mxu0 %v421
    %459 = vmatprep.subr.bf16.mxu0 0
    %460 = vmatpush1.bf16.msra.mxu0 %v422
    %461 = vmatprep.subr.bf16.mxu0 0
    %462 = vmatpush1.bf16.msra.mxu0 %v423
    %463 = vmatprep.subr.bf16.mxu0 0
    %464 = vmatpush1.bf16.msra.mxu0 %v424
    %465 = vmatprep.subr.bf16.mxu0 0
    %466 = vmatpush1.bf16.msra.mxu0 %v425
    %467 = vmatprep.subr.bf16.mxu0 0
    %468 = vmatpush1.bf16.msra.mxu0 %v426
    %469 = vmatprep.subr.bf16.mxu0 0
    %470 = vmatpush1.bf16.msra.mxu0 %v427
    %471 = vmatprep.subr.bf16.mxu0 0
    %472 = vmatpush1.bf16.msra.mxu0 %v428
    %473 = vmatprep.subr.bf16.mxu0 0
    %474 = vmatpush1.bf16.msra.mxu0 %v429
    %475 = vmatprep.subr.bf16.mxu0 0
    %476 = vmatpush1.bf16.msra.mxu0 %v430
    %477 = vmatprep.subr.bf16.mxu0 0
    %478 = vmatpush1.bf16.msra.mxu0 %v431
    %479 = vmatprep.subr.bf16.mxu0 0
    %480 = vmatpush1.bf16.msra.mxu0 %v432
    %481 = vmatprep.mubr.bf16.mxu0 %v346
    %482 = vmatmul.mubr.bf16.gmra.mrb[0].mxu0 %v345
    %v483 = vpop.f32.mrb[0].mxu0
    %v484 = vadd.f32 0.0, %v483
    %v485 = vpop.f32.mrb[0].mxu0
    %v486 = vpop.f32.mrb[0].mxu0
    %v487 = vadd.f32 0.0, %v486
    %v488 = vpop.f32.mrb[0].mxu0
    %489 = vmatprep.mubr.bf16.mxu0 %v348
    %490 = vmatmul.mubr.bf16.gmra.mrb[0].mxu0 %v347
    %v491 = vpop.f32.mrb[0].mxu0
    %v492 = vadd.f32 0.0, %v491
    %v493 = vpop.f32.mrb[0].mxu0
    %v494 = vpop.f32.mrb[0].mxu0
    %v495 = vadd.f32 0.0, %v494
    %v496 = vpop.f32.mrb[0].mxu0
    %497 = vmatprep.mubr.bf16.mxu0 %v350
    %498 = vmatmul.mubr.bf16.gmra.mrb[0].mxu0 %v349
    %v499 = vpop.f32.mrb[0].mxu0
    %v500 = vadd.f32 0.0, %v499
    %v501 = vpop.f32.mrb[0].mxu0
    %v502 = vpop.f32.mrb[0].mxu0
    %v503 = vadd.f32 0.0, %v502
    %v504 = vpop.f32.mrb[0].mxu0
    %505 = vmatprep.mubr.bf16.mxu0 %v352
    %506 = vmatmul.mubr.bf16.gmra.mrb[0].mxu0 %v351
    %v507 = vpop.f32.mrb[0].mxu0
    %v508 = vadd.f32 0.0, %v507
    %v509 = vpop.f32.mrb[0].mxu0
    %v510 = vpop.f32.mrb[0].mxu0
    %v511 = vadd.f32 0.0, %v510
    %v512 = vpop.f32.mrb[0].mxu0
    %513 = vdwg.mxu0
    %v514 = vadd.f32 %v484, %v487
    %v515 = vadd.f32 %v514, %v492
    %v516 = vadd.f32 %v515, %v495
    %v517 = vadd.f32 %v516, %v500
    %v518 = vadd.f32 %v517, %v503
    %v519 = vadd.f32 %v518, %v508
    %v520 = vadd.f32 %v519, %v511
    %v521 = vrot.slane %v520, 4
    %v522 = vadd.f32 %v520, %v521
    %v523 = vrot.slane %v522, 2
    %v524 = vadd.f32 %v522, %v523
    %v525 = vrot.slane %v524, 1
    %v526 = vadd.f32 %v524, %v525
    %v527 = vmul.f32 %v526, 0.015625
    %v528 = vmul.f32 %v484, %v484
    %v529 = vmul.f32 %v487, %v487
    %v530 = vmul.f32 %v492, %v492
    %v531 = vmul.f32 %v495, %v495
    %v532 = vmul.f32 %v500, %v500
    %v533 = vmul.f32 %v503, %v503
    %v534 = vmul.f32 %v508, %v508
    %v535 = vmul.f32 %v511, %v511
    %v536 = vadd.f32 %v528, %v529
    %v537 = vadd.f32 %v536, %v530
    %v538 = vadd.f32 %v537, %v531
    %v539 = vadd.f32 %v538, %v532
    %v540 = vadd.f32 %v539, %v533
    %v541 = vadd.f32 %v540, %v534
    %v542 = vadd.f32 %v541, %v535
    %v543 = vrot.slane %v542, 4
    %v544 = vadd.f32 %v542, %v543
    %v545 = vrot.slane %v544, 2
    %v546 = vadd.f32 %v544, %v545
    %v547 = vrot.slane %v546, 1
    %v548 = vadd.f32 %v546, %v547
    %v549 = vmul.f32 %v548, 0.015625
    %v550 = vmul.f32 %v527, %v527
    %v551 = vsub.f32 %v549, %v550
    %v552 = vmax.f32 %v551, 0.0
    %v553 = vadd.f32 %v552, 1e-05
    %v554 = vrsqrt.pop %v553
    %v555 = vmul.f32 %v344, %v554
    %v556 = vmul.f32 %v527, %v555
    %v558 = vrot.slane %v556, 7
    %v560 = vsub.f32 %v344, %v558
    %v561 = vlaneseq
    %v562 = vshrl.u32 %v561, 7
    %v563 = vsub.s32 0, %v562
    %v564 = vrot.slane %v555, %v563
    %v565 = vmul.f32 %v484, %v564
    %v566 = vmul.f32 %v487, %v564
    %v567 = vmul.f32 %v492, %v564
    %v568 = vmul.f32 %v495, %v564
    %v569 = vmul.f32 %v500, %v564
    %v570 = vmul.f32 %v503, %v564
    %v571 = vmul.f32 %v508, %v564
    %v572 = vmul.f32 %v511, %v564
    %v573 = vlaneseq
    %v574 = vshrl.u32 %v573, 7
    %v575 = vsub.s32 1, %v574
    %v576 = vrot.slane %v560, %v575
    %v577 = vadd.f32 %v565, %v576
    %v578 = vadd.f32 %v566, %v576
    %v579 = vadd.f32 %v567, %v576
    %v580 = vadd.f32 %v568, %v576
    %v581 = vadd.f32 %v569, %v576
    %v582 = vadd.f32 %v570, %v576
    %v583 = vadd.f32 %v571, %v576
    %v584 = vadd.f32 %v572, %v576
    %v585 = vmax.f32 %v577, 0.0
    %v586 = vmax.f32 %v578, 0.0
    %v587 = vmax.f32 %v579, 0.0
    %v588 = vmax.f32 %v580, 0.0
    %v589 = vmax.f32 %v581, 0.0
    %v590 = vmax.f32 %v582, 0.0
    %v591 = vmax.f32 %v583, 0.0
    %v592 = vmax.f32 %v584, 0.0
    %v593 = vld [vmem:[#allocation2 + $0x120] sm:$0xf]
    %v594 = vld [vmem:[#allocation2 + $0x128] sm:$0xf]
    %v595 = vld [vmem:[#allocation2 + $0x130] sm:$0xf]
    %v596 = vld [vmem:[#allocation2 + $0x138] sm:$0xf]
    %v597 = vld [vmem:[#allocation2 + $0x140] sm:$0xf]
    %v598 = vld [vmem:[#allocation2 + $0x148] sm:$0xf]
    %v599 = vld [vmem:[#allocation2 + $0x150] sm:$0xf]
    %v600 = vld [vmem:[#allocation2 + $0x158] sm:$0xf]
    %v601 = vld [vmem:[#allocation2 + $0x160] sm:$0xf]
    %v602 = vld [vmem:[#allocation2 + $0x168] sm:$0xf]
    %v603 = vld [vmem:[#allocation2 + $0x170] sm:$0xf]
    %v604 = vld [vmem:[#allocation2 + $0x178] sm:$0xf]
    %v605 = vld [vmem:[#allocation2 + $0x180] sm:$0xf]
    %v606 = vld [vmem:[#allocation2 + $0x188] sm:$0xf]
    %v607 = vld [vmem:[#allocation2 + $0x190] sm:$0xf]
    %v608 = vld [vmem:[#allocation2 + $0x198] sm:$0xf]
    %v609 = vld [vmem:[%s2 + $0x20] sm:$0x3]
    %v610 = vpack.c.bf16 %v586, %v585
    %v611 = vpack.c.bf16 %v588, %v587
    %v612 = vpack.c.bf16 %v590, %v589
    %v613 = vpack.c.bf16 %v592, %v591
    %v630 = vunpack.c.l.b16 %v593
    %v631 = vunpack.c.l.b16 %v594
    %v632 = vunpack.c.l.b16 %v595
    %v633 = vunpack.c.l.b16 %v596
    %v634 = vunpack.c.l.b16 %v597
    %v635 = vunpack.c.l.b16 %v598
    %v636 = vunpack.c.l.b16 %v599
    %v637 = vunpack.c.l.b16 %v600
    %v638 = vunpack.c.l.b16 %v601
    %v639 = vunpack.c.l.b16 %v602
    %v640 = vunpack.c.l.b16 %v603
    %v641 = vunpack.c.l.b16 %v604
    %v642 = vunpack.c.l.b16 %v605
    %v643 = vunpack.c.l.b16 %v606
    %v644 = vunpack.c.l.b16 %v607
    %v645 = vunpack.c.l.b16 %v608
    %v646 = vpack.c.b16 %v631, %v630
    %v647 = vpack.c.b16 %v633, %v632
    %v648 = vpack.c.b16 %v635, %v634
    %v649 = vpack.c.b16 %v637, %v636
    %v650 = vpack.c.b16 %v639, %v638
    %v651 = vpack.c.b16 %v641, %v640
    %v652 = vpack.c.b16 %v643, %v642
    %v653 = vpack.c.b16 %v645, %v644
    %662 = vmatprep.subr.bf16.mxu0 0
    %663 = vmatpush1.bf16.msra.mxu0 %v646
    %664 = vmatprep.subr.bf16.mxu0 0
    %665 = vmatpush1.bf16.msra.mxu0 %v647
    %666 = vmatprep.subr.bf16.mxu0 0
    %667 = vmatpush1.bf16.msra.mxu0 %v648
    %668 = vmatprep.subr.bf16.mxu0 0
    %669 = vmatpush1.bf16.msra.mxu0 %v649
    %670 = vmatprep.subr.bf16.mxu0 0
    %671 = vmatpush1.bf16.msra.mxu0 %v650
    %672 = vmatprep.subr.bf16.mxu0 0
    %673 = vmatpush1.bf16.msra.mxu0 %v651
    %674 = vmatprep.subr.bf16.mxu0 0
    %675 = vmatpush1.bf16.msra.mxu0 %v652
    %676 = vmatprep.subr.bf16.mxu0 0
    %677 = vmatpush1.bf16.msra.mxu0 %v653
    %678 = vmatprep.subr.bf16.mxu0 0
    %679 = vmatpush1.bf16.msra.mxu0 0
    %680 = vmatprep.subr.bf16.mxu0 0
    %681 = vmatpush1.bf16.msra.mxu0 0
    %682 = vmatprep.subr.bf16.mxu0 0
    %683 = vmatpush1.bf16.msra.mxu0 0
    %684 = vmatprep.subr.bf16.mxu0 0
    %685 = vmatpush1.bf16.msra.mxu0 0
    %686 = vmatprep.subr.bf16.mxu0 0
    %687 = vmatpush1.bf16.msra.mxu0 0
    %688 = vmatprep.subr.bf16.mxu0 0
    %689 = vmatpush1.bf16.msra.mxu0 0
    %690 = vmatprep.subr.bf16.mxu0 0
    %691 = vmatpush1.bf16.msra.mxu0 0
    %692 = vmatprep.subr.bf16.mxu0 0
    %693 = vmatpush1.bf16.msra.mxu0 0
    %694 = vmatprep.mubr.bf16.mxu0 0
    %695 = vmatmul.mubr.bf16.gmra.mrb[0].mxu0 %v610
    %v696 = vpop.f32.mrb[0].mxu0
    %v697 = vadd.f32 0.0, %v696
    %v698 = vpop.f32.mrb[0].mxu0
    %v699 = vpop.f32.mrb[0].mxu0
    %v700 = vadd.f32 0.0, %v699
    %v701 = vpop.f32.mrb[0].mxu0
    %702 = vmatprep.mubr.bf16.mxu0 0
    %703 = vmatmul.mubr.bf16.gmra.mrb[0].mxu0 %v611
    %v704 = vpop.f32.mrb[0].mxu0
    %v705 = vadd.f32 0.0, %v704
    %v706 = vpop.f32.mrb[0].mxu0
    %v707 = vpop.f32.mrb[0].mxu0
    %v708 = vadd.f32 0.0, %v707
    %v709 = vpop.f32.mrb[0].mxu0
    %710 = vmatprep.mubr.bf16.mxu0 0
    %711 = vmatmul.mubr.bf16.gmra.mrb[0].mxu0 %v612
    %v712 = vpop.f32.mrb[0].mxu0
    %v713 = vadd.f32 0.0, %v712
    %v714 = vpop.f32.mrb[0].mxu0
    %v715 = vpop.f32.mrb[0].mxu0
    %v716 = vadd.f32 0.0, %v715
    %v717 = vpop.f32.mrb[0].mxu0
    %718 = vmatprep.mubr.bf16.mxu0 0
    %719 = vmatmul.mubr.bf16.gmra.mrb[0].mxu0 %v613
    %v720 = vpop.f32.mrb[0].mxu0
    %v721 = vadd.f32 0.0, %v720
    %v722 = vpop.f32.mrb[0].mxu0
    %v723 = vpop.f32.mrb[0].mxu0
    %v724 = vadd.f32 0.0, %v723
    %v725 = vpop.f32.mrb[0].mxu0
    %726 = vdwg.mxu0
    %vm727 = vcmask 523264
    %v728 = vsel %vm727, %v697, 0.0
    %v729 = vsel %vm727, %v700, 0.0
    %v730 = vadd.f32 %v728, %v729
    %v731 = vsel %vm727, %v705, 0.0
    %v732 = vadd.f32 %v730, %v731
    %v733 = vsel %vm727, %v708, 0.0
    %v734 = vadd.f32 %v732, %v733
    %v735 = vsel %vm727, %v713, 0.0
    %v736 = vadd.f32 %v734, %v735
    %v737 = vsel %vm727, %v716, 0.0
    %v738 = vadd.f32 %v736, %v737
    %v739 = vsel %vm727, %v721, 0.0
    %v740 = vadd.f32 %v738, %v739
    %v741 = vsel %vm727, %v724, 0.0
    %v742 = vadd.f32 %v740, %v741
    %v743 = vrot.slane %v742, 4
    %v744 = vadd.f32 %v742, %v743
    %v745 = vrot.slane %v744, 2
    %v746 = vadd.f32 %v744, %v745
    %v747 = vrot.slane %v746, 1
    %v748 = vadd.f32 %v746, %v747
    %v749 = vmul.f32 %v748, 0.015625
    %v750 = vmul.f32 %v697, %v697
    %v751 = vmul.f32 %v700, %v700
    %v752 = vmul.f32 %v705, %v705
    %v753 = vmul.f32 %v708, %v708
    %v754 = vmul.f32 %v713, %v713
    %v755 = vmul.f32 %v716, %v716
    %v756 = vmul.f32 %v721, %v721
    %v757 = vmul.f32 %v724, %v724
    %v758 = vsel %vm727, %v750, 0.0
    %v759 = vsel %vm727, %v751, 0.0
    %v760 = vadd.f32 %v758, %v759
    %v761 = vsel %vm727, %v752, 0.0
    %v762 = vadd.f32 %v760, %v761
    %v763 = vsel %vm727, %v753, 0.0
    %v764 = vadd.f32 %v762, %v763
    %v765 = vsel %vm727, %v754, 0.0
    %v766 = vadd.f32 %v764, %v765
    %v767 = vsel %vm727, %v755, 0.0
    %v768 = vadd.f32 %v766, %v767
    %v769 = vsel %vm727, %v756, 0.0
    %v770 = vadd.f32 %v768, %v769
    %v771 = vsel %vm727, %v757, 0.0
    %v772 = vadd.f32 %v770, %v771
    %v773 = vrot.slane %v772, 4
    %v774 = vadd.f32 %v772, %v773
    %v775 = vrot.slane %v774, 2
    %v776 = vadd.f32 %v774, %v775
    %v777 = vrot.slane %v776, 1
    %v778 = vadd.f32 %v776, %v777
    %v779 = vmul.f32 %v778, 0.015625
    %v780 = vmul.f32 %v749, %v749
    %v781 = vsub.f32 %v779, %v780
    %v782 = vmax.f32 %v781, 0.0
    %v783 = vadd.f32 %v782, 1e-05
    %v784 = vrsqrt.pop %v783
    %v785 = vmul.f32 %v609, %v784
    %v786 = vmul.f32 %v749, %v785
    %v788 = vrot.slane %v786, 7
    %v790 = vsub.f32 %v609, %v788
    %v791 = vlaneseq
    %v792 = vshrl.u32 %v791, 7
    %v793 = vsub.s32 0, %v792
    %v794 = vrot.slane %v785, %v793
    %v795 = vmul.f32 %v697, %v794
    %v796 = vmul.f32 %v700, %v794
    %v797 = vmul.f32 %v705, %v794
    %v798 = vmul.f32 %v708, %v794
    %v799 = vmul.f32 %v713, %v794
    %v800 = vmul.f32 %v716, %v794
    %v801 = vmul.f32 %v721, %v794
    %v802 = vmul.f32 %v724, %v794
    %v803 = vlaneseq
    %v804 = vshrl.u32 %v803, 7
    %v805 = vsub.s32 1, %v804
    %v806 = vrot.slane %v790, %v805
    %v807 = vadd.f32 %v795, %v806
    %v808 = vadd.f32 %v796, %v806
    %v809 = vadd.f32 %v797, %v806
    %v810 = vadd.f32 %v798, %v806
    %v811 = vadd.f32 %v799, %v806
    %v812 = vadd.f32 %v800, %v806
    %v813 = vadd.f32 %v801, %v806
    %v814 = vadd.f32 %v802, %v806
    %v815 = vmax.f32 %v807, 0.0
    %v816 = vmax.f32 %v808, 0.0
    %v817 = vmax.f32 %v809, 0.0
    %v818 = vmax.f32 %v810, 0.0
    %v819 = vmax.f32 %v811, 0.0
    %v820 = vmax.f32 %v812, 0.0
    %v821 = vmax.f32 %v813, 0.0
    %v822 = vmax.f32 %v814, 0.0
    %v823 = vld [vmem:[#allocation2 + $0x1a0] sm:$0xf]
    %v824 = vld [vmem:[#allocation2 + $0x1a8] sm:$0xf]
    %v825 = vld [vmem:[#allocation2 + $0x1b0] sm:$0xf]
    %v826 = vld [vmem:[#allocation2 + $0x1b8] sm:$0xf]
    %v827 = vld [vmem:[#allocation2 + $0x1c0] sm:$0xf]
    %v828 = vld [vmem:[#allocation2 + $0x1c8] sm:$0xf]
    %v829 = vld [vmem:[#allocation2 + $0x1d0] sm:$0xf]
    %v830 = vld [vmem:[#allocation2 + $0x1d8] sm:$0xf]
    %v831 = vld [vmem:[%s2 + $0x30] sm:$0x3]
    %v832 = vpack.c.bf16 %v816, %v815
    %v833 = vpack.c.bf16 %v818, %v817
    %v834 = vpack.c.bf16 %v820, %v819
    %v835 = vpack.c.bf16 %v822, %v821
    %v844 = vunpack.c.l.b16 %v823
    %v845 = vunpack.c.l.b16 %v824
    %v846 = vunpack.c.l.b16 %v825
    %v847 = vunpack.c.l.b16 %v826
    %v848 = vunpack.c.l.b16 %v827
    %v849 = vunpack.c.l.b16 %v828
    %v850 = vunpack.c.l.b16 %v829
    %v851 = vunpack.c.l.b16 %v830
    %v852 = vpack.c.b16 %v845, %v844
    %v853 = vpack.c.b16 %v847, %v846
    %v854 = vpack.c.b16 %v849, %v848
    %v855 = vpack.c.b16 %v851, %v850
    %v861 = vsel %vm727, %v832, 0
    %v864 = vsel %vm727, %v833, 0
    %v867 = vsel %vm727, %v834, 0
    %v870 = vsel %vm727, %v835, 0
    %872 = vmatprep.subr.bf16.mxu0 0
    %873 = vmatpush1.bf16.msra.mxu0 %v852
    %874 = vmatprep.subr.bf16.mxu0 0
    %875 = vmatpush1.bf16.msra.mxu0 %v853
    %876 = vmatprep.subr.bf16.mxu0 0
    %877 = vmatpush1.bf16.msra.mxu0 %v854
    %878 = vmatprep.subr.bf16.mxu0 0
    %879 = vmatpush1.bf16.msra.mxu0 %v855
    %880 = vmatprep.subr.bf16.mxu0 0
    %881 = vmatpush1.bf16.msra.mxu0 0
    %882 = vmatprep.subr.bf16.mxu0 0
    %883 = vmatpush1.bf16.msra.mxu0 0
    %884 = vmatprep.subr.bf16.mxu0 0
    %885 = vmatpush1.bf16.msra.mxu0 0
    %886 = vmatprep.subr.bf16.mxu0 0
    %887 = vmatpush1.bf16.msra.mxu0 0
    %888 = vmatprep.subr.bf16.mxu0 0
    %889 = vmatpush1.bf16.msra.mxu0 0
    %890 = vmatprep.subr.bf16.mxu0 0
    %891 = vmatpush1.bf16.msra.mxu0 0
    %892 = vmatprep.subr.bf16.mxu0 0
    %893 = vmatpush1.bf16.msra.mxu0 0
    %894 = vmatprep.subr.bf16.mxu0 0
    %895 = vmatpush1.bf16.msra.mxu0 0
    %896 = vmatprep.subr.bf16.mxu0 0
    %897 = vmatpush1.bf16.msra.mxu0 0
    %898 = vmatprep.subr.bf16.mxu0 0
    %899 = vmatpush1.bf16.msra.mxu0 0
    %900 = vmatprep.subr.bf16.mxu0 0
    %901 = vmatpush1.bf16.msra.mxu0 0
    %902 = vmatprep.subr.bf16.mxu0 0
    %903 = vmatpush1.bf16.msra.mxu0 0
    %904 = vmatprep.mubr.bf16.mxu0 0
    %905 = vmatmul.mubr.bf16.gmra.mrb[0].mxu0 %v861
    %v906 = vpop.f32.mrb[0].mxu0
    %v907 = vadd.f32 0.0, %v906
    %v908 = vpop.f32.mrb[0].mxu0
    %v909 = vpop.f32.mrb[0].mxu0
    %v910 = vadd.f32 0.0, %v909
    %v911 = vpop.f32.mrb[0].mxu0
    %912 = vmatprep.mubr.bf16.mxu0 0
    %913 = vmatmul.mubr.bf16.gmra.mrb[0].mxu0 %v864
    %v914 = vpop.f32.mrb[0].mxu0
    %v915 = vadd.f32 0.0, %v914
    %v916 = vpop.f32.mrb[0].mxu0
    %v917 = vpop.f32.mrb[0].mxu0
    %v918 = vadd.f32 0.0, %v917
    %v919 = vpop.f32.mrb[0].mxu0
    %920 = vmatprep.mubr.bf16.mxu0 0
    %921 = vmatmul.mubr.bf16.gmra.mrb[0].mxu0 %v867
    %v922 = vpop.f32.mrb[0].mxu0
    %v923 = vadd.f32 0.0, %v922
    %v924 = vpop.f32.mrb[0].mxu0
    %v925 = vpop.f32.mrb[0].mxu0
    %v926 = vadd.f32 0.0, %v925
    %v927 = vpop.f32.mrb[0].mxu0
    %928 = vmatprep.mubr.bf16.mxu0 0
    %929 = vmatmul.mubr.bf16.gmra.mrb[0].mxu0 %v870
    %v930 = vpop.f32.mrb[0].mxu0
    %v931 = vadd.f32 0.0, %v930
    %v932 = vpop.f32.mrb[0].mxu0
    %v933 = vpop.f32.mrb[0].mxu0
    %v934 = vadd.f32 0.0, %v933
    %v935 = vpop.f32.mrb[0].mxu0
    %936 = vdwg.mxu0
    %v937 = vsel %vm68, %v907, 0.0
    %v938 = vsel %vm68, %v910, 0.0
    %v939 = vadd.f32 %v937, %v938
    %v940 = vsel %vm68, %v915, 0.0
    %v941 = vadd.f32 %v939, %v940
    %v942 = vsel %vm68, %v918, 0.0
    %v943 = vadd.f32 %v941, %v942
    %v944 = vsel %vm68, %v923, 0.0
    %v945 = vadd.f32 %v943, %v944
    %v946 = vsel %vm68, %v926, 0.0
    %v947 = vadd.f32 %v945, %v946
    %v948 = vsel %vm68, %v931, 0.0
    %v949 = vadd.f32 %v947, %v948
    %v950 = vsel %vm68, %v934, 0.0
    %v951 = vadd.f32 %v949, %v950
    %v952 = vrot.slane %v951, 4
    %v953 = vadd.f32 %v951, %v952
    %v954 = vrot.slane %v953, 2
    %v955 = vadd.f32 %v953, %v954
    %v956 = vrot.slane %v955, 1
    %v957 = vadd.f32 %v955, %v956
    %v958 = vmul.f32 %v957, 0.015625
    %v959 = vmul.f32 %v907, %v907
    %v960 = vmul.f32 %v910, %v910
    %v961 = vmul.f32 %v915, %v915
    %v962 = vmul.f32 %v918, %v918
    %v963 = vmul.f32 %v923, %v923
    %v964 = vmul.f32 %v926, %v926
    %v965 = vmul.f32 %v931, %v931
    %v966 = vmul.f32 %v934, %v934
    %v967 = vsel %vm68, %v959, 0.0
    %v968 = vsel %vm68, %v960, 0.0
    %v969 = vadd.f32 %v967, %v968
    %v970 = vsel %vm68, %v961, 0.0
    %v971 = vadd.f32 %v969, %v970
    %v972 = vsel %vm68, %v962, 0.0
    %v973 = vadd.f32 %v971, %v972
    %v974 = vsel %vm68, %v963, 0.0
    %v975 = vadd.f32 %v973, %v974
    %v976 = vsel %vm68, %v964, 0.0
    %v977 = vadd.f32 %v975, %v976
    %v978 = vsel %vm68, %v965, 0.0
    %v979 = vadd.f32 %v977, %v978
    %v980 = vsel %vm68, %v966, 0.0
    %v981 = vadd.f32 %v979, %v980
    %v982 = vrot.slane %v981, 4
    %v983 = vadd.f32 %v981, %v982
    %v984 = vrot.slane %v983, 2
    %v985 = vadd.f32 %v983, %v984
    %v986 = vrot.slane %v985, 1
    %v987 = vadd.f32 %v985, %v986
    %v988 = vmul.f32 %v987, 0.015625
    %v989 = vmul.f32 %v958, %v958
    %v990 = vsub.f32 %v988, %v989
    %v991 = vmax.f32 %v990, 0.0
    %v992 = vadd.f32 %v991, 1e-05
    %v993 = vrsqrt.pop %v992
    %v994 = vmul.f32 %v831, %v993
    %v995 = vmul.f32 %v958, %v994
    %v997 = vrot.slane %v995, 7
    %v999 = vsub.f32 %v831, %v997
    %v1000 = vlaneseq
    %v1001 = vshrl.u32 %v1000, 7
    %v1002 = vsub.s32 0, %v1001
    %v1003 = vrot.slane %v994, %v1002
    %v1004 = vmul.f32 %v907, %v1003
    %v1005 = vmul.f32 %v910, %v1003
    %v1006 = vmul.f32 %v915, %v1003
    %v1007 = vmul.f32 %v918, %v1003
    %v1008 = vmul.f32 %v923, %v1003
    %v1009 = vmul.f32 %v926, %v1003
    %v1010 = vmul.f32 %v931, %v1003
    %v1011 = vmul.f32 %v934, %v1003
    %v1012 = vlaneseq
    %v1013 = vshrl.u32 %v1012, 7
    %v1014 = vsub.s32 1, %v1013
    %v1015 = vrot.slane %v999, %v1014
    %v1016 = vadd.f32 %v1004, %v1015
    %v1017 = vadd.f32 %v1005, %v1015
    %v1018 = vadd.f32 %v1006, %v1015
    %v1019 = vadd.f32 %v1007, %v1015
    %v1020 = vadd.f32 %v1008, %v1015
    %v1021 = vadd.f32 %v1009, %v1015
    %v1022 = vadd.f32 %v1010, %v1015
    %v1023 = vadd.f32 %v1011, %v1015
    %v1024 = vmax.f32 %v1016, 0.0
    %v1025 = vmax.f32 %v1017, 0.0
    %v1026 = vmax.f32 %v1018, 0.0
    %v1027 = vmax.f32 %v1019, 0.0
    %v1028 = vmax.f32 %v1020, 0.0
    %v1029 = vmax.f32 %v1021, 0.0
    %v1030 = vmax.f32 %v1022, 0.0
    %v1031 = vmax.f32 %v1023, 0.0
    %v1032 = vld [vmem:[#allocation2 + $0x1e0] sm:$0xf]
    %v1033 = vld [vmem:[#allocation2 + $0x1e8] sm:$0xf]
    %v1034 = vld [vmem:[#allocation2 + $0x1f0] sm:$0xf]
    %v1035 = vld [vmem:[#allocation2 + $0x1f8] sm:$0xf]
    %v1036 = vld [vmem:[%s2 + $0x40] sm:$0x3]
    %v1037 = vpack.c.bf16 %v1025, %v1024
    %v1038 = vpack.c.bf16 %v1027, %v1026
    %v1039 = vpack.c.bf16 %v1029, %v1028
    %v1040 = vpack.c.bf16 %v1031, %v1030
    %v1045 = vunpack.c.l.b16 %v1032
    %v1046 = vunpack.c.l.b16 %v1033
    %v1047 = vunpack.c.l.b16 %v1034
    %v1048 = vunpack.c.l.b16 %v1035
    %v1049 = vpack.c.b16 %v1046, %v1045
    %v1050 = vpack.c.b16 %v1048, %v1047
    %v1054 = vsel %vm68, %v1037, 0
    %v1057 = vsel %vm68, %v1038, 0
    %v1060 = vsel %vm68, %v1039, 0
    %v1063 = vsel %vm68, %v1040, 0
    %1065 = vmatprep.subr.bf16.mxu0 0
    %1066 = vmatpush1.bf16.msra.mxu0 %v1049
    %1067 = vmatprep.subr.bf16.mxu0 0
    %1068 = vmatpush1.bf16.msra.mxu0 %v1050
    %1069 = vmatprep.subr.bf16.mxu0 0
    %1070 = vmatpush1.bf16.msra.mxu0 0
    %1071 = vmatprep.subr.bf16.mxu0 0
    %1072 = vmatpush1.bf16.msra.mxu0 0
    %1073 = vmatprep.subr.bf16.mxu0 0
    %1074 = vmatpush1.bf16.msra.mxu0 0
    %1075 = vmatprep.subr.bf16.mxu0 0
    %1076 = vmatpush1.bf16.msra.mxu0 0
    %1077 = vmatprep.subr.bf16.mxu0 0
    %1078 = vmatpush1.bf16.msra.mxu0 0
    %1079 = vmatprep.subr.bf16.mxu0 0
    %1080 = vmatpush1.bf16.msra.mxu0 0
    %1081 = vmatprep.subr.bf16.mxu0 0
    %1082 = vmatpush1.bf16.msra.mxu0 0
    %1083 = vmatprep.subr.bf16.mxu0 0
    %1084 = vmatpush1.bf16.msra.mxu0 0
    %1085 = vmatprep.subr.bf16.mxu0 0
    %1086 = vmatpush1.bf16.msra.mxu0 0
    %1087 = vmatprep.subr.bf16.mxu0 0
    %1088 = vmatpush1.bf16.msra.mxu0 0
    %1089 = vmatprep.subr.bf16.mxu0 0
    %1090 = vmatpush1.bf16.msra.mxu0 0
    %1091 = vmatprep.subr.bf16.mxu0 0
    %1092 = vmatpush1.bf16.msra.mxu0 0
    %1093 = vmatprep.subr.bf16.mxu0 0
    %1094 = vmatpush1.bf16.msra.mxu0 0
    %1095 = vmatprep.subr.bf16.mxu0 0
    %1096 = vmatpush1.bf16.msra.mxu0 0
    %1097 = vmatprep.mubr.bf16.mxu0 0
    %1098 = vmatmul.mubr.bf16.gmra.mrb[0].mxu0 %v1054
    %v1099 = vpop.f32.mrb[0].mxu0
    %v1100 = vadd.f32 0.0, %v1099
    %v1101 = vpop.f32.mrb[0].mxu0
    %v1102 = vpop.f32.mrb[0].mxu0
    %v1103 = vadd.f32 0.0, %v1102
    %v1104 = vpop.f32.mrb[0].mxu0
    %1105 = vmatprep.mubr.bf16.mxu0 0
    %1106 = vmatmul.mubr.bf16.gmra.mrb[0].mxu0 %v1057
    %v1107 = vpop.f32.mrb[0].mxu0
    %v1108 = vadd.f32 0.0, %v1107
    %v1109 = vpop.f32.mrb[0].mxu0
    %v1110 = vpop.f32.mrb[0].mxu0
    %v1111 = vadd.f32 0.0, %v1110
    %v1112 = vpop.f32.mrb[0].mxu0
    %1113 = vmatprep.mubr.bf16.mxu0 0
    %1114 = vmatmul.mubr.bf16.gmra.mrb[0].mxu0 %v1060
    %v1115 = vpop.f32.mrb[0].mxu0
    %v1116 = vadd.f32 0.0, %v1115
    %v1117 = vpop.f32.mrb[0].mxu0
    %v1118 = vpop.f32.mrb[0].mxu0
    %v1119 = vadd.f32 0.0, %v1118
    %v1120 = vpop.f32.mrb[0].mxu0
    %1121 = vmatprep.mubr.bf16.mxu0 0
    %1122 = vmatmul.mubr.bf16.gmra.mrb[0].mxu0 %v1063
    %v1123 = vpop.f32.mrb[0].mxu0
    %v1124 = vadd.f32 0.0, %v1123
    %v1125 = vpop.f32.mrb[0].mxu0
    %v1126 = vpop.f32.mrb[0].mxu0
    %v1127 = vadd.f32 0.0, %v1126
    %v1128 = vpop.f32.mrb[0].mxu0
    %1129 = vdwg.mxu0
    %vm1130 = vcmask 130048
    %v1131 = vsel %vm1130, %v1100, 0.0
    %v1132 = vsel %vm1130, %v1103, 0.0
    %v1133 = vadd.f32 %v1131, %v1132
    %v1134 = vsel %vm1130, %v1108, 0.0
    %v1135 = vadd.f32 %v1133, %v1134
    %v1136 = vsel %vm1130, %v1111, 0.0
    %v1137 = vadd.f32 %v1135, %v1136
    %v1138 = vsel %vm1130, %v1116, 0.0
    %v1139 = vadd.f32 %v1137, %v1138
    %v1140 = vsel %vm1130, %v1119, 0.0
    %v1141 = vadd.f32 %v1139, %v1140
    %v1142 = vsel %vm1130, %v1124, 0.0
    %v1143 = vadd.f32 %v1141, %v1142
    %v1144 = vsel %vm1130, %v1127, 0.0
    %v1145 = vadd.f32 %v1143, %v1144
    %v1146 = vrot.slane %v1145, 4
    %v1147 = vadd.f32 %v1145, %v1146
    %v1148 = vrot.slane %v1147, 2
    %v1149 = vadd.f32 %v1147, %v1148
    %v1150 = vrot.slane %v1149, 1
    %v1151 = vadd.f32 %v1149, %v1150
    %v1152 = vmul.f32 %v1151, 0.015625
    %v1153 = vmul.f32 %v1100, %v1100
    %v1154 = vmul.f32 %v1103, %v1103
    %v1155 = vmul.f32 %v1108, %v1108
    %v1156 = vmul.f32 %v1111, %v1111
    %v1157 = vmul.f32 %v1116, %v1116
    %v1158 = vmul.f32 %v1119, %v1119
    %v1159 = vmul.f32 %v1124, %v1124
    %v1160 = vmul.f32 %v1127, %v1127
    %v1161 = vsel %vm1130, %v1153, 0.0
    %v1162 = vsel %vm1130, %v1154, 0.0
    %v1163 = vadd.f32 %v1161, %v1162
    %v1164 = vsel %vm1130, %v1155, 0.0
    %v1165 = vadd.f32 %v1163, %v1164
    %v1166 = vsel %vm1130, %v1156, 0.0
    %v1167 = vadd.f32 %v1165, %v1166
    %v1168 = vsel %vm1130, %v1157, 0.0
    %v1169 = vadd.f32 %v1167, %v1168
    %v1170 = vsel %vm1130, %v1158, 0.0
    %v1171 = vadd.f32 %v1169, %v1170
    %v1172 = vsel %vm1130, %v1159, 0.0
    %v1173 = vadd.f32 %v1171, %v1172
    %v1174 = vsel %vm1130, %v1160, 0.0
    %v1175 = vadd.f32 %v1173, %v1174
    %v1176 = vrot.slane %v1175, 4
    %v1177 = vadd.f32 %v1175, %v1176
    %v1178 = vrot.slane %v1177, 2
    %v1179 = vadd.f32 %v1177, %v1178
    %v1180 = vrot.slane %v1179, 1
    %v1181 = vadd.f32 %v1179, %v1180
    %v1182 = vmul.f32 %v1181, 0.015625
    %v1183 = vmul.f32 %v1152, %v1152
    %v1184 = vsub.f32 %v1182, %v1183
    %v1185 = vmax.f32 %v1184, 0.0
    %v1186 = vadd.f32 %v1185, 1e-05
    %v1187 = vrsqrt.pop %v1186
    %v1188 = vmul.f32 %v1036, %v1187
    %v1189 = vmul.f32 %v1152, %v1188
    %v1191 = vrot.slane %v1189, 7
    %v1193 = vsub.f32 %v1036, %v1191
    %v1194 = vlaneseq
    %v1195 = vshrl.u32 %v1194, 7
    %v1196 = vsub.s32 0, %v1195
    %v1197 = vrot.slane %v1188, %v1196
    %v1198 = vmul.f32 %v1100, %v1197
    %v1199 = vmul.f32 %v1103, %v1197
    %v1200 = vmul.f32 %v1108, %v1197
    %v1201 = vmul.f32 %v1111, %v1197
    %v1202 = vmul.f32 %v1116, %v1197
    %v1203 = vmul.f32 %v1119, %v1197
    %v1204 = vmul.f32 %v1124, %v1197
    %v1205 = vmul.f32 %v1127, %v1197
    %v1206 = vlaneseq
    %v1207 = vshrl.u32 %v1206, 7
    %v1208 = vsub.s32 1, %v1207
    %v1209 = vrot.slane %v1193, %v1208
    %v1210 = vadd.f32 %v1198, %v1209
    %v1211 = vadd.f32 %v1199, %v1209
    %v1212 = vadd.f32 %v1200, %v1209
    %v1213 = vadd.f32 %v1201, %v1209
    %v1214 = vadd.f32 %v1202, %v1209
    %v1215 = vadd.f32 %v1203, %v1209
    %v1216 = vadd.f32 %v1204, %v1209
    %v1217 = vadd.f32 %v1205, %v1209
    %v1218 = vmax.f32 %v1210, 0.0
    %v1219 = vmax.f32 %v1211, 0.0
    %v1220 = vmax.f32 %v1212, 0.0
    %v1221 = vmax.f32 %v1213, 0.0
    %v1222 = vmax.f32 %v1214, 0.0
    %v1223 = vmax.f32 %v1215, 0.0
    %v1224 = vmax.f32 %v1216, 0.0
    %v1225 = vmax.f32 %v1217, 0.0
    %v1226 = vld [vmem:[#allocation2 + $0x200] sm:$0xf]
    %v1227 = vld [vmem:[#allocation2 + $0x208] sm:$0xf]
    %v1228 = vld [vmem:[%s2 + $0x50] sm:$0x3]
    %v1229 = vpack.c.bf16 %v1219, %v1218
    %v1230 = vpack.c.bf16 %v1221, %v1220
    %v1231 = vpack.c.bf16 %v1223, %v1222
    %v1232 = vpack.c.bf16 %v1225, %v1224
    %v1235 = vunpack.c.l.b16 %v1226
    %v1236 = vunpack.c.l.b16 %v1227
    %v1237 = vpack.c.b16 %v1236, %v1235
    %v1240 = vsel %vm1130, %v1229, 0
    %v1243 = vsel %vm1130, %v1230, 0
    %v1246 = vsel %vm1130, %v1231, 0
    %v1249 = vsel %vm1130, %v1232, 0
    %1251 = vmatprep.subr.bf16.mxu0 0
    %1252 = vmatpush1.bf16.msra.mxu0 %v1237
    %1253 = vmatprep.subr.bf16.mxu0 0
    %1254 = vmatpush1.bf16.msra.mxu0 0
    %1255 = vmatprep.subr.bf16.mxu0 0
    %1256 = vmatpush1.bf16.msra.mxu0 0
    %1257 = vmatprep.subr.bf16.mxu0 0
    %1258 = vmatpush1.bf16.msra.mxu0 0
    %1259 = vmatprep.subr.bf16.mxu0 0
    %1260 = vmatpush1.bf16.msra.mxu0 0
    %1261 = vmatprep.subr.bf16.mxu0 0
    %1262 = vmatpush1.bf16.msra.mxu0 0
    %1263 = vmatprep.subr.bf16.mxu0 0
    %1264 = vmatpush1.bf16.msra.mxu0 0
    %1265 = vmatprep.subr.bf16.mxu0 0
    %1266 = vmatpush1.bf16.msra.mxu0 0
    %1267 = vmatprep.subr.bf16.mxu0 0
    %1268 = vmatpush1.bf16.msra.mxu0 0
    %1269 = vmatprep.subr.bf16.mxu0 0
    %1270 = vmatpush1.bf16.msra.mxu0 0
    %1271 = vmatprep.subr.bf16.mxu0 0
    %1272 = vmatpush1.bf16.msra.mxu0 0
    %1273 = vmatprep.subr.bf16.mxu0 0
    %1274 = vmatpush1.bf16.msra.mxu0 0
    %1275 = vmatprep.subr.bf16.mxu0 0
    %1276 = vmatpush1.bf16.msra.mxu0 0
    %1277 = vmatprep.subr.bf16.mxu0 0
    %1278 = vmatpush1.bf16.msra.mxu0 0
    %1279 = vmatprep.subr.bf16.mxu0 0
    %1280 = vmatpush1.bf16.msra.mxu0 0
    %1281 = vmatprep.subr.bf16.mxu0 0
    %1282 = vmatpush1.bf16.msra.mxu0 0
    %1283 = vmatprep.mubr.bf16.mxu0 0
    %1284 = vmatmul.mubr.bf16.gmra.mrb[0].mxu0 %v1240
    %v1285 = vpop.f32.mrb[0].mxu0
    %v1286 = vadd.f32 0.0, %v1285
    %v1287 = vpop.f32.mrb[0].mxu0
    %v1288 = vpop.f32.mrb[0].mxu0
    %v1289 = vadd.f32 0.0, %v1288
    %v1290 = vpop.f32.mrb[0].mxu0
    %1291 = vmatprep.mubr.bf16.mxu0 0
    %1292 = vmatmul.mubr.bf16.gmra.mrb[0].mxu0 %v1243
    %v1293 = vpop.f32.mrb[0].mxu0
    %v1294 = vadd.f32 0.0, %v1293
    %v1295 = vpop.f32.mrb[0].mxu0
    %v1296 = vpop.f32.mrb[0].mxu0
    %v1297 = vadd.f32 0.0, %v1296
    %v1298 = vpop.f32.mrb[0].mxu0
    %1299 = vmatprep.mubr.bf16.mxu0 0
    %1300 = vmatmul.mubr.bf16.gmra.mrb[0].mxu0 %v1246
    %v1301 = vpop.f32.mrb[0].mxu0
    %v1302 = vadd.f32 0.0, %v1301
    %v1303 = vpop.f32.mrb[0].mxu0
    %v1304 = vpop.f32.mrb[0].mxu0
    %v1305 = vadd.f32 0.0, %v1304
    %v1306 = vpop.f32.mrb[0].mxu0
    %1307 = vmatprep.mubr.bf16.mxu0 0
    %1308 = vmatmul.mubr.bf16.gmra.mrb[0].mxu0 %v1249
    %v1309 = vpop.f32.mrb[0].mxu0
    %v1310 = vadd.f32 0.0, %v1309
    %v1311 = vpop.f32.mrb[0].mxu0
    %v1312 = vpop.f32.mrb[0].mxu0
    %v1313 = vadd.f32 0.0, %v1312
    %v1314 = vpop.f32.mrb[0].mxu0
    %1315 = vdwg.mxu0
    %v1316 = vadd.f32 %v1286, %v1289
    %v1317 = vadd.f32 %v1316, %v1294
    %v1318 = vadd.f32 %v1317, %v1297
    %v1319 = vadd.f32 %v1318, %v1302
    %v1320 = vadd.f32 %v1319, %v1305
    %v1321 = vadd.f32 %v1320, %v1310
    %v1322 = vadd.f32 %v1321, %v1313
    %v1323 = vrot.slane %v1322, 4
    %v1324 = vadd.f32 %v1322, %v1323
    %v1325 = vrot.slane %v1324, 2
    %v1326 = vadd.f32 %v1324, %v1325
    %v1327 = vrot.slane %v1326, 1
    %v1328 = vadd.f32 %v1326, %v1327
    %v1329 = vmul.f32 %v1328, 0.015625
    %v1330 = vmul.f32 %v1286, %v1286
    %v1331 = vmul.f32 %v1289, %v1289
    %v1332 = vmul.f32 %v1294, %v1294
    %v1333 = vmul.f32 %v1297, %v1297
    %v1334 = vmul.f32 %v1302, %v1302
    %v1335 = vmul.f32 %v1305, %v1305
    %v1336 = vmul.f32 %v1310, %v1310
    %v1337 = vmul.f32 %v1313, %v1313
    %v1338 = vadd.f32 %v1330, %v1331
    %v1339 = vadd.f32 %v1338, %v1332
    %v1340 = vadd.f32 %v1339, %v1333
    %v1341 = vadd.f32 %v1340, %v1334
    %v1342 = vadd.f32 %v1341, %v1335
    %v1343 = vadd.f32 %v1342, %v1336
    %v1344 = vadd.f32 %v1343, %v1337
    %v1345 = vrot.slane %v1344, 4
    %v1346 = vadd.f32 %v1344, %v1345
    %v1347 = vrot.slane %v1346, 2
    %v1348 = vadd.f32 %v1346, %v1347
    %v1349 = vrot.slane %v1348, 1
    %v1350 = vadd.f32 %v1348, %v1349
    %v1351 = vmul.f32 %v1350, 0.015625
    %v1352 = vmul.f32 %v1329, %v1329
    %v1353 = vsub.f32 %v1351, %v1352
    %v1354 = vmax.f32 %v1353, 0.0
    %v1355 = vadd.f32 %v1354, 1e-05
    %v1356 = vrsqrt.pop %v1355
    %v1357 = vmul.f32 %v1228, %v1356
    %v1358 = vmul.f32 %v1329, %v1357
    %v1360 = vrot.slane %v1358, 7
    %v1362 = vsub.f32 %v1228, %v1360
    %v1363 = vlaneseq
    %v1364 = vshrl.u32 %v1363, 7
    %v1365 = vsub.s32 0, %v1364
    %v1366 = vrot.slane %v1357, %v1365
    %v1367 = vmul.f32 %v1286, %v1366
    %v1368 = vmul.f32 %v1289, %v1366
    %v1369 = vmul.f32 %v1294, %v1366
    %v1370 = vmul.f32 %v1297, %v1366
    %v1371 = vmul.f32 %v1302, %v1366
    %v1372 = vmul.f32 %v1305, %v1366
    %v1373 = vmul.f32 %v1310, %v1366
    %v1374 = vmul.f32 %v1313, %v1366
    %v1375 = vlaneseq
    %v1376 = vshrl.u32 %v1375, 7
    %v1377 = vsub.s32 1, %v1376
    %v1378 = vrot.slane %v1362, %v1377
    %v1379 = vadd.f32 %v1367, %v1378
    %v1380 = vadd.f32 %v1368, %v1378
    %v1381 = vadd.f32 %v1369, %v1378
    %v1382 = vadd.f32 %v1370, %v1378
    %v1383 = vadd.f32 %v1371, %v1378
    %v1384 = vadd.f32 %v1372, %v1378
    %v1385 = vadd.f32 %v1373, %v1378
    %v1386 = vadd.f32 %v1374, %v1378
    %v1387 = vmax.f32 %v1379, 0.0
    %v1388 = vmax.f32 %v1380, 0.0
    %v1389 = vmax.f32 %v1381, 0.0
    %v1390 = vmax.f32 %v1382, 0.0
    %v1391 = vmax.f32 %v1383, 0.0
    %v1392 = vmax.f32 %v1384, 0.0
    %v1393 = vmax.f32 %v1385, 0.0
    %v1394 = vmax.f32 %v1386, 0.0
    %1395 = vst [vmem:[#allocation5] sm:$0xff] %v1387
    %1396 = vst [vmem:[#allocation5 + $0x8] sm:$0xff] %v1388
    %1397 = vst [vmem:[#allocation5 + $0x10] sm:$0xff] %v1389
    %1398 = vst [vmem:[#allocation5 + $0x18] sm:$0xff] %v1390
    %1399 = vst [vmem:[#allocation5 + $0x20] sm:$0xff] %v1391
    %1400 = vst [vmem:[#allocation5 + $0x28] sm:$0xff] %v1392
    %1401 = vst [vmem:[#allocation5 + $0x30] sm:$0xff] %v1393
    %1402 = vst [vmem:[#allocation5 + $0x38] sm:$0xff] %v1394
    // Predicated region
    $region18: #{baseline_mlp_forward_padded.1} parent=1 // pred_check
      _
    $region19: #{baseline_mlp_forward_padded.1} parent=1 // pred_check_branch
      %1404 = sbr.rel (0) target = $region21
    $region20: #{baseline_mlp_forward_padded.1} parent=1 // pred_region
      %s1406 = ssub.s32 1024, 1024
      %1407 = vsyncadd [#allocation4], %s1406
      %s1408 = sshll.u32 [#allocation5], 4
      %s1409 = int_to_ptr.vmem [resolvable:$true] %s1408
      %1414 = dma.vmem_to_hbm [thread:$0]  %s1409, 1024, %s3, [#allocation4], 128, 128, 8
    $region21: #{baseline_mlp_forward_padded.1} parent=1 // pred_fallthru
      _
    // Predicated region
    $region22: #{baseline_mlp_forward_padded.1} parent=1 // pred_check
      _
    $region23: #{baseline_mlp_forward_padded.1} parent=1 // pred_check_branch
      %1416 = sbr.rel (0) target = $region25
    $region24: #{baseline_mlp_forward_padded.1} parent=1 // pred_region
      %1417 = dma.done [#allocation4], 1024
    $region25: #{baseline_mlp_forward_padded.1} parent=1 // pred_fallthru
      _
    %1418 = vsyncpa [#allocation3], 1
    %1419 = vsyncpa [#allocation4], 1

</llo_original>
